<compile_context>
chip_gen: v7x
topology: tpu7x:2x2x1
jax: 0.10.0
libtpu: 0.0.40
codegen_flags: <defaults>
</compile_context>

<pallas_src>
import jax
import jax.numpy as jnp
from jax import lax
from jax.experimental import pallas as pl
from jax.experimental.pallas import tpu as pltpu


# -----------------------------------------------------------------------------
# Kernel
# -----------------------------------------------------------------------------
def _lstm_kernel(x_ref,       # (T, B, 1)  f32   input sequence (time-major)
                 small_ref,   # (8, 4H)    f32   packed small params (rows: wih0, b0, b1, wfc, bfc)
                 wpack_ref,   # (3H, 4H)   bf16  packed weights: [whh0 ; w1_ih ; w1_hh]
                 out_ref):    # (B, 1)     f32
    T, B, _ = x_ref.shape
    H4 = small_ref.shape[1]
    H = H4 // 4

    # ---- small f32 parameter slab --------------------------------------------
    small = small_ref[...]                       # (8, 4H)
    wih0 = small[0:1, :]                         # (1, 4H)  layer-0 input weights (In == 1)
    b0   = small[1:2, :]                         # (1, 4H)  layer-0 fused bias
    b1   = small[2:3, :]                         # (1, 4H)  layer-1 fused bias
    wfc  = small[3:4, :H]                        # (1, H)   fc weight
    bfc  = small[4:5, 0:1]                       # (1, 1)   fc bias

    # ---- bf16 MXU weights (tile-aligned sublane slices of one slab) ----------
    whh0 = wpack_ref[0:H, :]                     # (H, 4H)  layer-0 recurrent
    w1i  = wpack_ref[H:2 * H, :]                 # (H, 4H)  layer-1 input (from h0)
    w1h  = wpack_ref[2 * H:3 * H, :]             # (H, 4H)  layer-1 recurrent (from h1)

    # ---- hoisted input projection, kept in registers -------------------------
    # x_t @ W_ih_l0^T + (b_ih_l0 + b_hh_l0) for every timestep at once (In == 1).
    xp = x_ref[...] * wih0 + b0                  # (T, B, 4H) f32

    # ---- loop-invariant activation masks (gate column order [f, i, o, g]) ----
    lane = lax.broadcasted_iota(jnp.int32, (B, H4), 1)
    is_g = lane >= 3 * H
    pre_scale = jnp.where(is_g, 1.0, 0.5).astype(jnp.float32)   # tanh lanes: x ; sigmoid lanes: x/2
    post_off  = jnp.where(is_g, 0.0, 0.5).astype(jnp.float32)

    def combine(gates, c):
        # One EUP tanh for all four gates: sigmoid(x) = 0.5 * (tanh(x/2) + 1).
        t = jnp.tanh(gates * pre_scale)
        act = t * pre_scale + post_off           # [sig(f), sig(i), sig(o), tanh(g)]
        # Half-lane rotation (2H of 4H lanes) -> direction-invariant block swap.
        swp = pltpu.roll(act, 2 * H, axis=1)     # [sig(o), tanh(g), sig(f), sig(i)]
        ig = (act * swp)[:, H:2 * H]             # sig(i) * tanh(g)        (one 32-lane slice)
        c_new = act[:, :H] * c + ig              # sig(f)*c + sig(i)*tanh(g)   (offset-0 slice)
        h_new = swp[:, :H] * jnp.tanh(c_new)     # sig(o)*tanh(c_new)          (offset-0 slice)
        return h_new, c_new

    bf16 = jnp.bfloat16
    z = jnp.zeros((B, H), jnp.float32)
    h0, c0, h1, c1 = z, z, z, z

    for t in range(T):                           # T = 8, fully unrolled (static trip count)
        # Layer-1 recurrent contribution depends only on the *previous* step's h1,
        # so it is off the critical chain and overlaps with layer-0 work.
        part1 = jnp.dot(h1.astype(bf16), w1h, preferred_element_type=jnp.float32)
        # Layer 0: hoisted x-projection + single recurrent dot (bf16 operands, f32 acc).
        g0 = xp[t] + jnp.dot(h0.astype(bf16), whh0, preferred_element_type=jnp.float32)
        h0, c0 = combine(g0, c0)
        # Layer 1: input-dot on the fresh h0 + precomputed recurrent part.
        g1 = jnp.dot(h0.astype(bf16), w1i, preferred_element_type=jnp.float32) + part1 + b1
        h1, c1 = combine(g1, c1)

    # fc on the last timestep's top-layer hidden state: (B, H) -> (B, 1)
    out_ref[...] = jnp.sum(h1 * wfc, axis=-1, keepdims=True) + bfc


# -----------------------------------------------------------------------------
# Wrapper
# -----------------------------------------------------------------------------
def lstm_failure_predictor(x, kparams):
    """x: (B, T, 1) float32 -> (B, 1) float32 (matches the PyTorch module)."""
    B, T, _ = x.shape
    x_tbi = jnp.transpose(x, (1, 0, 2)).astype(jnp.float32)   # (T, B, 1) time-major
    vmem = pl.BlockSpec(memory_space=pltpu.MemorySpace.VMEM)
    return pl.pallas_call(
        _lstm_kernel,
        out_shape=jax.ShapeDtypeStruct((B, 1), jnp.float32),
        in_specs=[vmem] * 3,
        out_specs=vmem,
    )(x_tbi, kparams["small"], kparams["wpack"])


# -----------------------------------------------------------------------------
# Parameter construction / packing
# -----------------------------------------------------------------------------
def make_params(key, input_size=1, hidden_size=32):
    """Synthetic params with PyTorch nn.LSTM / nn.Linear shapes and gate order [i,f,g,o]."""
    H = hidden_size
    k = 1.0 / jnp.sqrt(jnp.float32(H))
    keys = jax.random.split(key, 10)

    def u(kk, shape):
        return jax.random.uniform(kk, shape, jnp.float32, -k, k)

    return {
        "w_ih_l0": u(keys[0], (4 * H, input_size)),
        "w_hh_l0": u(keys[1], (4 * H, H)),
        "b_ih_l0": u(keys[2], (4 * H,)),
        "b_hh_l0": u(keys[3], (4 * H,)),
        "w_ih_l1": u(keys[4], (4 * H, H)),
        "w_hh_l1": u(keys[5], (4 * H, H)),
        "b_ih_l1": u(keys[6], (4 * H,)),
        "b_hh_l1": u(keys[7], (4 * H,)),
        "w_fc":    u(keys[8], (1, H)),
        "b_fc":    u(keys[9], (1,)),
    }


def _perm_gates(w, H):
    """Reorder PyTorch gate chunks [i, f, g, o] -> kernel order [f, i, o, g] along axis 0."""
    i, f, g, o = w[0:H], w[H:2 * H], w[2 * H:3 * H], w[3 * H:4 * H]
    return jnp.concatenate([f, i, o, g], axis=0)


def pack_params(p, hidden_size=32, input_size=1):
    """Pre-transpose / permute / cast weights into the kernel layout (2 packed slabs)."""
    H = hidden_size
    # The single-vreg gate trick (4H == 128 lanes) and the broadcast input projection
    # hard-code these sizes; fail loudly otherwise.
    assert H == 32, "kernel layout assumes hidden_size == 32 (4H == 128 lanes)"
    assert input_size == 1, "kernel input projection assumes input_size == 1"
    perm = lambda w: _perm_gates(w, H)

    # --- f32 small-parameter slab: (8, 4H), rows [wih0, b0, b1, wfc|0, bfc] ----
    wih0_row = perm(p["w_ih_l0"]).reshape(4 * H)                       # (4H,)  since In == 1
    b0_row   = perm(p["b_ih_l0"] + p["b_hh_l0"])                       # (4H,)
    b1_row   = perm(p["b_ih_l1"] + p["b_hh_l1"])                       # (4H,)
    wfc_row  = jnp.concatenate([p["w_fc"].reshape(H),
                                jnp.zeros((3 * H,), jnp.float32)])     # (4H,)
    bfc_row  = jnp.full((4 * H,), p["b_fc"].reshape(())[()], jnp.float32)
    zrow     = jnp.zeros((4 * H,), jnp.float32)
    small = jnp.stack([wih0_row, b0_row, b1_row, wfc_row, bfc_row,
                       zrow, zrow, zrow], axis=0).astype(jnp.float32)  # (8, 4H)

    # --- bf16 weight slab: (3H, 4H) = [whh0 ; w1_ih ; w1_hh] -------------------
    whh0 = perm(p["w_hh_l0"]).T                                        # (H, 4H)
    w1i  = perm(p["w_ih_l1"]).T                                        # (H, 4H)
    w1h  = perm(p["w_hh_l1"]).T                                        # (H, 4H)
    wpack = jnp.concatenate([whh0, w1i, w1h], axis=0).astype(jnp.bfloat16)

    return {"small": small, "wpack": wpack}


# -----------------------------------------------------------------------------
# Pure-JAX reference (PyTorch layout / gate order, independent of kernel packing)
# -----------------------------------------------------------------------------
def reference_forward(x, p, hidden_size=32):
    H = hidden_size
    B, T, _ = x.shape

    def cell(x_t, h, c, w_ih, w_hh, b_ih, b_hh):
        gates = x_t @ w_ih.T + h @ w_hh.T + b_ih + b_hh
        i = jax.nn.sigmoid(gates[:, 0 * H:1 * H])
        f = jax.nn.sigmoid(gates[:, 1 * H:2 * H])
        g = jnp.tanh(gates[:, 2 * H:3 * H])
        o = jax.nn.sigmoid(gates[:, 3 * H:4 * H])
        c_new = f * c + i * g
        return o * jnp.tanh(c_new), c_new

    h0 = c0 = h1 = c1 = jnp.zeros((B, H), jnp.float32)
    for t in range(T):
        x_t = x[:, t, :]
        h0, c0 = cell(x_t, h0, c0, p["w_ih_l0"], p["w_hh_l0"], p["b_ih_l0"], p["b_hh_l0"])
        h1, c1 = cell(h0, h1, c1, p["w_ih_l1"], p["w_hh_l1"], p["b_ih_l1"], p["b_hh_l1"])
    return h1 @ p["w_fc"].T + p["b_fc"]


if __name__ == "__main__":
    key = jax.random.PRNGKey(0)
    k_x, k_p = jax.random.split(key)

    B, T, In, H = 2, 8, 1, 32
    x = jax.random.normal(k_x, (B, T, In), jnp.float32)
    raw = make_params(k_p, input_size=In, hidden_size=H)
    kparams = pack_params(raw, hidden_size=H, input_size=In)

    out = lstm_failure_predictor(x, kparams)
    out = jax.block_until_ready(out)

    ref = reference_forward(x, raw, hidden_size=H)
    assert out.shape == (B, 1)
    # Tolerance loosened (1e-5 -> 1e-2) because the MXU operands are bf16;
    # accumulation and all c/h state math remain f32, bounding drift over T=8.
    assert jnp.allclose(out, ref, atol=1e-2, rtol=1e-2), (out, ref)

    print("KERNEL_OK")
</pallas_src>

<mosaic_0001>
module attributes {stable_mosaic.version = 11 : i64} {
  func.func @_lstm_kernel(%arg0: memref<8x2x1xf32, #tpu.memory_space<vmem>>, %arg1: memref<8x128xf32, #tpu.memory_space<vmem>>, %arg2: memref<96x128xbf16, #tpu.memory_space<vmem>>, %arg3: memref<2x1xf32, #tpu.memory_space<vmem>>) attributes {dimension_semantics = [], scalar_prefetch = 0 : i64, scratch_operands = 0 : i64, tpu.core_type = #tpu.core_type<tc>} {
    %c0 = arith.constant 0 : index
    %c0_0 = arith.constant 0 : index
    %0 = vector.load %arg1[%c0, %c0_0] : memref<8x128xf32, #tpu.memory_space<vmem>>, vector<8x128xf32>
    %1 = vector.extract_strided_slice %0 {offsets = [0, 0], sizes = [1, 128], strides = [1, 1]} : vector<8x128xf32> to vector<1x128xf32>
    %2 = vector.extract_strided_slice %0 {offsets = [1, 0], sizes = [1, 128], strides = [1, 1]} : vector<8x128xf32> to vector<1x128xf32>
    %3 = vector.extract_strided_slice %0 {offsets = [2, 0], sizes = [1, 128], strides = [1, 1]} : vector<8x128xf32> to vector<1x128xf32>
    %4 = vector.extract_strided_slice %0 {offsets = [3, 0], sizes = [1, 32], strides = [1, 1]} : vector<8x128xf32> to vector<1x32xf32>
    %5 = vector.extract_strided_slice %0 {offsets = [4, 0], sizes = [1, 1], strides = [1, 1]} : vector<8x128xf32> to vector<1x1xf32>
    %c0_1 = arith.constant 0 : index
    %c0_2 = arith.constant 0 : index
    %6 = vector.load %arg2[%c0_1, %c0_2] : memref<96x128xbf16, #tpu.memory_space<vmem>>, vector<32x128xbf16>
    %c32 = arith.constant 32 : index
    %c0_3 = arith.constant 0 : index
    %7 = vector.load %arg2[%c32, %c0_3] : memref<96x128xbf16, #tpu.memory_space<vmem>>, vector<32x128xbf16>
    %c64 = arith.constant 64 : index
    %c0_4 = arith.constant 0 : index
    %8 = vector.load %arg2[%c64, %c0_4] : memref<96x128xbf16, #tpu.memory_space<vmem>>, vector<32x128xbf16>
    %c0_5 = arith.constant 0 : index
    %c0_6 = arith.constant 0 : index
    %c0_7 = arith.constant 0 : index
    %9 = vector.load %arg0[%c0_5, %c0_6, %c0_7] : memref<8x2x1xf32, #tpu.memory_space<vmem>>, vector<8x2x1xf32>
    %10 = vector.shape_cast %1 : vector<1x128xf32> to vector<1x1x128xf32>
    %11 = vector.broadcast %9 : vector<8x2x1xf32> to vector<8x2x128xf32>
    %12 = vector.broadcast %10 : vector<1x1x128xf32> to vector<8x2x128xf32>
    %13 = arith.mulf %11, %12 : vector<8x2x128xf32>
    %14 = vector.shape_cast %2 : vector<1x128xf32> to vector<1x1x128xf32>
    %15 = vector.broadcast %14 : vector<1x1x128xf32> to vector<8x2x128xf32>
    %16 = arith.addf %13, %15 : vector<8x2x128xf32>
    %17 = tpu.iota {dimensions = array<i32: 1>} : vector<2x128xi32>
    %c96_i32 = arith.constant 96 : i32
    %18 = vector.broadcast %c96_i32 : i32 to vector<2x128xi32>
    %19 = arith.cmpi sge, %17, %18 : vector<2x128xi32>
    %cst = arith.constant 1.000000e+00 : f32
    %cst_8 = arith.constant 5.000000e-01 : f32
    %20 = vector.broadcast %cst : f32 to vector<2x128xf32>
    %21 = vector.broadcast %cst_8 : f32 to vector<2x128xf32>
    %22 = arith.select %19, %20, %21 : vector<2x128xi1>, vector<2x128xf32>
    %cst_9 = arith.constant 0.000000e+00 : f32
    %cst_10 = arith.constant 5.000000e-01 : f32
    %23 = vector.broadcast %cst_9 : f32 to vector<2x128xf32>
    %24 = vector.broadcast %cst_10 : f32 to vector<2x128xf32>
    %25 = arith.select %19, %23, %24 : vector<2x128xi1>, vector<2x128xf32>
    %cst_11 = arith.constant 0.000000e+00 : f32
    %26 = vector.broadcast %cst_11 : f32 to vector<2x32xf32>
    %27 = arith.truncf %26 : vector<2x32xf32> to vector<2x32xbf16>
    %cst_12 = arith.constant dense<0.000000e+00> : vector<2x128xf32>
    %28 = tpu.matmul %27, %8, %cst_12 {dimension_numbers = #tpu.dot_dimension_numbers<[1], [0], [0], [1], [0, 0, 1, 1], [], []>} : vector<2x32xbf16>, vector<32x128xbf16>, vector<2x128xf32> -> vector<2x128xf32>
    %29 = vector.extract_strided_slice %16 {offsets = [0, 0, 0], sizes = [1, 2, 128], strides = [1, 1, 1]} : vector<8x2x128xf32> to vector<1x2x128xf32>
    %30 = vector.shape_cast %29 : vector<1x2x128xf32> to vector<2x128xf32>
    %31 = arith.truncf %26 : vector<2x32xf32> to vector<2x32xbf16>
    %cst_13 = arith.constant dense<0.000000e+00> : vector<2x128xf32>
    %32 = tpu.matmul %31, %6, %cst_13 {dimension_numbers = #tpu.dot_dimension_numbers<[1], [0], [0], [1], [0, 0, 1, 1], [], []>} : vector<2x32xbf16>, vector<32x128xbf16>, vector<2x128xf32> -> vector<2x128xf32>
    %33 = arith.addf %30, %32 : vector<2x128xf32>
    %34 = arith.mulf %33, %22 : vector<2x128xf32>
    %35 = math.tanh %34 : vector<2x128xf32>
    %36 = arith.mulf %35, %22 : vector<2x128xf32>
    %37 = arith.addf %36, %25 : vector<2x128xf32>
    %c64_i32 = arith.constant 64 : i32
    %38 = tpu.dynamic_rotate %37 by %c64_i32 dim 1 : vector<2x128xf32>, i32 -> vector<2x128xf32>
    %39 = arith.mulf %37, %38 : vector<2x128xf32>
    %40 = vector.extract_strided_slice %39 {offsets = [0, 32], sizes = [2, 32], strides = [1, 1]} : vector<2x128xf32> to vector<2x32xf32>
    %41 = vector.extract_strided_slice %37 {offsets = [0, 0], sizes = [2, 32], strides = [1, 1]} : vector<2x128xf32> to vector<2x32xf32>
    %42 = arith.mulf %41, %26 : vector<2x32xf32>
    %43 = arith.addf %42, %40 : vector<2x32xf32>
    %44 = vector.extract_strided_slice %38 {offsets = [0, 0], sizes = [2, 32], strides = [1, 1]} : vector<2x128xf32> to vector<2x32xf32>
    %45 = math.tanh %43 : vector<2x32xf32>
    %46 = arith.mulf %44, %45 : vector<2x32xf32>
    %47 = arith.truncf %46 : vector<2x32xf32> to vector<2x32xbf16>
    %cst_14 = arith.constant dense<0.000000e+00> : vector<2x128xf32>
    %48 = tpu.matmul %47, %7, %cst_14 {dimension_numbers = #tpu.dot_dimension_numbers<[1], [0], [0], [1], [0, 0, 1, 1], [], []>} : vector<2x32xbf16>, vector<32x128xbf16>, vector<2x128xf32> -> vector<2x128xf32>
    %49 = arith.addf %48, %28 : vector<2x128xf32>
    %50 = vector.broadcast %3 : vector<1x128xf32> to vector<2x128xf32>
    %51 = arith.addf %49, %50 : vector<2x128xf32>
    %52 = arith.mulf %51, %22 : vector<2x128xf32>
    %53 = math.tanh %52 : vector<2x128xf32>
    %54 = arith.mulf %53, %22 : vector<2x128xf32>
    %55 = arith.addf %54, %25 : vector<2x128xf32>
    %c64_i32_15 = arith.constant 64 : i32
    %56 = tpu.dynamic_rotate %55 by %c64_i32_15 dim 1 : vector<2x128xf32>, i32 -> vector<2x128xf32>
    %57 = arith.mulf %55, %56 : vector<2x128xf32>
    %58 = vector.extract_strided_slice %57 {offsets = [0, 32], sizes = [2, 32], strides = [1, 1]} : vector<2x128xf32> to vector<2x32xf32>
    %59 = vector.extract_strided_slice %55 {offsets = [0, 0], sizes = [2, 32], strides = [1, 1]} : vector<2x128xf32> to vector<2x32xf32>
    %60 = arith.mulf %59, %26 : vector<2x32xf32>
    %61 = arith.addf %60, %58 : vector<2x32xf32>
    %62 = vector.extract_strided_slice %56 {offsets = [0, 0], sizes = [2, 32], strides = [1, 1]} : vector<2x128xf32> to vector<2x32xf32>
    %63 = math.tanh %61 : vector<2x32xf32>
    %64 = arith.mulf %62, %63 : vector<2x32xf32>
    %65 = arith.truncf %64 : vector<2x32xf32> to vector<2x32xbf16>
    %cst_16 = arith.constant dense<0.000000e+00> : vector<2x128xf32>
    %66 = tpu.matmul %65, %8, %cst_16 {dimension_numbers = #tpu.dot_dimension_numbers<[1], [0], [0], [1], [0, 0, 1, 1], [], []>} : vector<2x32xbf16>, vector<32x128xbf16>, vector<2x128xf32> -> vector<2x128xf32>
    %67 = vector.extract_strided_slice %16 {offsets = [1, 0, 0], sizes = [1, 2, 128], strides = [1, 1, 1]} : vector<8x2x128xf32> to vector<1x2x128xf32>
    %68 = vector.shape_cast %67 : vector<1x2x128xf32> to vector<2x128xf32>
    %69 = arith.truncf %46 : vector<2x32xf32> to vector<2x32xbf16>
    %cst_17 = arith.constant dense<0.000000e+00> : vector<2x128xf32>
    %70 = tpu.matmul %69, %6, %cst_17 {dimension_numbers = #tpu.dot_dimension_numbers<[1], [0], [0], [1], [0, 0, 1, 1], [], []>} : vector<2x32xbf16>, vector<32x128xbf16>, vector<2x128xf32> -> vector<2x128xf32>
    %71 = arith.addf %68, %70 : vector<2x128xf32>
    %72 = arith.mulf %71, %22 : vector<2x128xf32>
    %73 = math.tanh %72 : vector<2x128xf32>
    %74 = arith.mulf %73, %22 : vector<2x128xf32>
    %75 = arith.addf %74, %25 : vector<2x128xf32>
    %c64_i32_18 = arith.constant 64 : i32
    %76 = tpu.dynamic_rotate %75 by %c64_i32_18 dim 1 : vector<2x128xf32>, i32 -> vector<2x128xf32>
    %77 = arith.mulf %75, %76 : vector<2x128xf32>
    %78 = vector.extract_strided_slice %77 {offsets = [0, 32], sizes = [2, 32], strides = [1, 1]} : vector<2x128xf32> to vector<2x32xf32>
    %79 = vector.extract_strided_slice %75 {offsets = [0, 0], sizes = [2, 32], strides = [1, 1]} : vector<2x128xf32> to vector<2x32xf32>
    %80 = arith.mulf %79, %43 : vector<2x32xf32>
    %81 = arith.addf %80, %78 : vector<2x32xf32>
    %82 = vector.extract_strided_slice %76 {offsets = [0, 0], sizes = [2, 32], strides = [1, 1]} : vector<2x128xf32> to vector<2x32xf32>
    %83 = math.tanh %81 : vector<2x32xf32>
    %84 = arith.mulf %82, %83 : vector<2x32xf32>
    %85 = arith.truncf %84 : vector<2x32xf32> to vector<2x32xbf16>
    %cst_19 = arith.constant dense<0.000000e+00> : vector<2x128xf32>
    %86 = tpu.matmul %85, %7, %cst_19 {dimension_numbers = #tpu.dot_dimension_numbers<[1], [0], [0], [1], [0, 0, 1, 1], [], []>} : vector<2x32xbf16>, vector<32x128xbf16>, vector<2x128xf32> -> vector<2x128xf32>
    %87 = arith.addf %86, %66 : vector<2x128xf32>
    %88 = vector.broadcast %3 : vector<1x128xf32> to vector<2x128xf32>
    %89 = arith.addf %87, %88 : vector<2x128xf32>
    %90 = arith.mulf %89, %22 : vector<2x128xf32>
    %91 = math.tanh %90 : vector<2x128xf32>
    %92 = arith.mulf %91, %22 : vector<2x128xf32>
    %93 = arith.addf %92, %25 : vector<2x128xf32>
    %c64_i32_20 = arith.constant 64 : i32
    %94 = tpu.dynamic_rotate %93 by %c64_i32_20 dim 1 : vector<2x128xf32>, i32 -> vector<2x128xf32>
    %95 = arith.mulf %93, %94 : vector<2x128xf32>
    %96 = vector.extract_strided_slice %95 {offsets = [0, 32], sizes = [2, 32], strides = [1, 1]} : vector<2x128xf32> to vector<2x32xf32>
    %97 = vector.extract_strided_slice %93 {offsets = [0, 0], sizes = [2, 32], strides = [1, 1]} : vector<2x128xf32> to vector<2x32xf32>
    %98 = arith.mulf %97, %61 : vector<2x32xf32>
    %99 = arith.addf %98, %96 : vector<2x32xf32>
    %100 = vector.extract_strided_slice %94 {offsets = [0, 0], sizes = [2, 32], strides = [1, 1]} : vector<2x128xf32> to vector<2x32xf32>
    %101 = math.tanh %99 : vector<2x32xf32>
    %102 = arith.mulf %100, %101 : vector<2x32xf32>
    %103 = arith.truncf %102 : vector<2x32xf32> to vector<2x32xbf16>
    %cst_21 = arith.constant dense<0.000000e+00> : vector<2x128xf32>
    %104 = tpu.matmul %103, %8, %cst_21 {dimension_numbers = #tpu.dot_dimension_numbers<[1], [0], [0], [1], [0, 0, 1, 1], [], []>} : vector<2x32xbf16>, vector<32x128xbf16>, vector<2x128xf32> -> vector<2x128xf32>
    %105 = vector.extract_strided_slice %16 {offsets = [2, 0, 0], sizes = [1, 2, 128], strides = [1, 1, 1]} : vector<8x2x128xf32> to vector<1x2x128xf32>
    %106 = vector.shape_cast %105 : vector<1x2x128xf32> to vector<2x128xf32>
    %107 = arith.truncf %84 : vector<2x32xf32> to vector<2x32xbf16>
    %cst_22 = arith.constant dense<0.000000e+00> : vector<2x128xf32>
    %108 = tpu.matmul %107, %6, %cst_22 {dimension_numbers = #tpu.dot_dimension_numbers<[1], [0], [0], [1], [0, 0, 1, 1], [], []>} : vector<2x32xbf16>, vector<32x128xbf16>, vector<2x128xf32> -> vector<2x128xf32>
    %109 = arith.addf %106, %108 : vector<2x128xf32>
    %110 = arith.mulf %109, %22 : vector<2x128xf32>
    %111 = math.tanh %110 : vector<2x128xf32>
    %112 = arith.mulf %111, %22 : vector<2x128xf32>
    %113 = arith.addf %112, %25 : vector<2x128xf32>
    %c64_i32_23 = arith.constant 64 : i32
    %114 = tpu.dynamic_rotate %113 by %c64_i32_23 dim 1 : vector<2x128xf32>, i32 -> vector<2x128xf32>
    %115 = arith.mulf %113, %114 : vector<2x128xf32>
    %116 = vector.extract_strided_slice %115 {offsets = [0, 32], sizes = [2, 32], strides = [1, 1]} : vector<2x128xf32> to vector<2x32xf32>
    %117 = vector.extract_strided_slice %113 {offsets = [0, 0], sizes = [2, 32], strides = [1, 1]} : vector<2x128xf32> to vector<2x32xf32>
    %118 = arith.mulf %117, %81 : vector<2x32xf32>
    %119 = arith.addf %118, %116 : vector<2x32xf32>
    %120 = vector.extract_strided_slice %114 {offsets = [0, 0], sizes = [2, 32], strides = [1, 1]} : vector<2x128xf32> to vector<2x32xf32>
    %121 = math.tanh %119 : vector<2x32xf32>
    %122 = arith.mulf %120, %121 : vector<2x32xf32>
    %123 = arith.truncf %122 : vector<2x32xf32> to vector<2x32xbf16>
    %cst_24 = arith.constant dense<0.000000e+00> : vector<2x128xf32>
    %124 = tpu.matmul %123, %7, %cst_24 {dimension_numbers = #tpu.dot_dimension_numbers<[1], [0], [0], [1], [0, 0, 1, 1], [], []>} : vector<2x32xbf16>, vector<32x128xbf16>, vector<2x128xf32> -> vector<2x128xf32>
    %125 = arith.addf %124, %104 : vector<2x128xf32>
    %126 = vector.broadcast %3 : vector<1x128xf32> to vector<2x128xf32>
    %127 = arith.addf %125, %126 : vector<2x128xf32>
    %128 = arith.mulf %127, %22 : vector<2x128xf32>
    %129 = math.tanh %128 : vector<2x128xf32>
    %130 = arith.mulf %129, %22 : vector<2x128xf32>
    %131 = arith.addf %130, %25 : vector<2x128xf32>
    %c64_i32_25 = arith.constant 64 : i32
    %132 = tpu.dynamic_rotate %131 by %c64_i32_25 dim 1 : vector<2x128xf32>, i32 -> vector<2x128xf32>
    %133 = arith.mulf %131, %132 : vector<2x128xf32>
    %134 = vector.extract_strided_slice %133 {offsets = [0, 32], sizes = [2, 32], strides = [1, 1]} : vector<2x128xf32> to vector<2x32xf32>
    %135 = vector.extract_strided_slice %131 {offsets = [0, 0], sizes = [2, 32], strides = [1, 1]} : vector<2x128xf32> to vector<2x32xf32>
    %136 = arith.mulf %135, %99 : vector<2x32xf32>
    %137 = arith.addf %136, %134 : vector<2x32xf32>
    %138 = vector.extract_strided_slice %132 {offsets = [0, 0], sizes = [2, 32], strides = [1, 1]} : vector<2x128xf32> to vector<2x32xf32>
    %139 = math.tanh %137 : vector<2x32xf32>
    %140 = arith.mulf %138, %139 : vector<2x32xf32>
    %141 = arith.truncf %140 : vector<2x32xf32> to vector<2x32xbf16>
    %cst_26 = arith.constant dense<0.000000e+00> : vector<2x128xf32>
    %142 = tpu.matmul %141, %8, %cst_26 {dimension_numbers = #tpu.dot_dimension_numbers<[1], [0], [0], [1], [0, 0, 1, 1], [], []>} : vector<2x32xbf16>, vector<32x128xbf16>, vector<2x128xf32> -> vector<2x128xf32>
    %143 = vector.extract_strided_slice %16 {offsets = [3, 0, 0], sizes = [1, 2, 128], strides = [1, 1, 1]} : vector<8x2x128xf32> to vector<1x2x128xf32>
    %144 = vector.shape_cast %143 : vector<1x2x128xf32> to vector<2x128xf32>
    %145 = arith.truncf %122 : vector<2x32xf32> to vector<2x32xbf16>
    %cst_27 = arith.constant dense<0.000000e+00> : vector<2x128xf32>
    %146 = tpu.matmul %145, %6, %cst_27 {dimension_numbers = #tpu.dot_dimension_numbers<[1], [0], [0], [1], [0, 0, 1, 1], [], []>} : vector<2x32xbf16>, vector<32x128xbf16>, vector<2x128xf32> -> vector<2x128xf32>
    %147 = arith.addf %144, %146 : vector<2x128xf32>
    %148 = arith.mulf %147, %22 : vector<2x128xf32>
    %149 = math.tanh %148 : vector<2x128xf32>
    %150 = arith.mulf %149, %22 : vector<2x128xf32>
    %151 = arith.addf %150, %25 : vector<2x128xf32>
    %c64_i32_28 = arith.constant 64 : i32
    %152 = tpu.dynamic_rotate %151 by %c64_i32_28 dim 1 : vector<2x128xf32>, i32 -> vector<2x128xf32>
    %153 = arith.mulf %151, %152 : vector<2x128xf32>
    %154 = vector.extract_strided_slice %153 {offsets = [0, 32], sizes = [2, 32], strides = [1, 1]} : vector<2x128xf32> to vector<2x32xf32>
    %155 = vector.extract_strided_slice %151 {offsets = [0, 0], sizes = [2, 32], strides = [1, 1]} : vector<2x128xf32> to vector<2x32xf32>
    %156 = arith.mulf %155, %119 : vector<2x32xf32>
    %157 = arith.addf %156, %154 : vector<2x32xf32>
    %158 = vector.extract_strided_slice %152 {offsets = [0, 0], sizes = [2, 32], strides = [1, 1]} : vector<2x128xf32> to vector<2x32xf32>
    %159 = math.tanh %157 : vector<2x32xf32>
    %160 = arith.mulf %158, %159 : vector<2x32xf32>
    %161 = arith.truncf %160 : vector<2x32xf32> to vector<2x32xbf16>
    %cst_29 = arith.constant dense<0.000000e+00> : vector<2x128xf32>
    %162 = tpu.matmul %161, %7, %cst_29 {dimension_numbers = #tpu.dot_dimension_numbers<[1], [0], [0], [1], [0, 0, 1, 1], [], []>} : vector<2x32xbf16>, vector<32x128xbf16>, vector<2x128xf32> -> vector<2x128xf32>
    %163 = arith.addf %162, %142 : vector<2x128xf32>
    %164 = vector.broadcast %3 : vector<1x128xf32> to vector<2x128xf32>
    %165 = arith.addf %163, %164 : vector<2x128xf32>
    %166 = arith.mulf %165, %22 : vector<2x128xf32>
    %167 = math.tanh %166 : vector<2x128xf32>
    %168 = arith.mulf %167, %22 : vector<2x128xf32>
    %169 = arith.addf %168, %25 : vector<2x128xf32>
    %c64_i32_30 = arith.constant 64 : i32
    %170 = tpu.dynamic_rotate %169 by %c64_i32_30 dim 1 : vector<2x128xf32>, i32 -> vector<2x128xf32>
    %171 = arith.mulf %169, %170 : vector<2x128xf32>
    %172 = vector.extract_strided_slice %171 {offsets = [0, 32], sizes = [2, 32], strides = [1, 1]} : vector<2x128xf32> to vector<2x32xf32>
    %173 = vector.extract_strided_slice %169 {offsets = [0, 0], sizes = [2, 32], strides = [1, 1]} : vector<2x128xf32> to vector<2x32xf32>
    %174 = arith.mulf %173, %137 : vector<2x32xf32>
    %175 = arith.addf %174, %172 : vector<2x32xf32>
    %176 = vector.extract_strided_slice %170 {offsets = [0, 0], sizes = [2, 32], strides = [1, 1]} : vector<2x128xf32> to vector<2x32xf32>
    %177 = math.tanh %175 : vector<2x32xf32>
    %178 = arith.mulf %176, %177 : vector<2x32xf32>
    %179 = arith.truncf %178 : vector<2x32xf32> to vector<2x32xbf16>
    %cst_31 = arith.constant dense<0.000000e+00> : vector<2x128xf32>
    %180 = tpu.matmul %179, %8, %cst_31 {dimension_numbers = #tpu.dot_dimension_numbers<[1], [0], [0], [1], [0, 0, 1, 1], [], []>} : vector<2x32xbf16>, vector<32x128xbf16>, vector<2x128xf32> -> vector<2x128xf32>
    %181 = vector.extract_strided_slice %16 {offsets = [4, 0, 0], sizes = [1, 2, 128], strides = [1, 1, 1]} : vector<8x2x128xf32> to vector<1x2x128xf32>
    %182 = vector.shape_cast %181 : vector<1x2x128xf32> to vector<2x128xf32>
    %183 = arith.truncf %160 : vector<2x32xf32> to vector<2x32xbf16>
    %cst_32 = arith.constant dense<0.000000e+00> : vector<2x128xf32>
    %184 = tpu.matmul %183, %6, %cst_32 {dimension_numbers = #tpu.dot_dimension_numbers<[1], [0], [0], [1], [0, 0, 1, 1], [], []>} : vector<2x32xbf16>, vector<32x128xbf16>, vector<2x128xf32> -> vector<2x128xf32>
    %185 = arith.addf %182, %184 : vector<2x128xf32>
    %186 = arith.mulf %185, %22 : vector<2x128xf32>
    %187 = math.tanh %186 : vector<2x128xf32>
    %188 = arith.mulf %187, %22 : vector<2x128xf32>
    %189 = arith.addf %188, %25 : vector<2x128xf32>
    %c64_i32_33 = arith.constant 64 : i32
    %190 = tpu.dynamic_rotate %189 by %c64_i32_33 dim 1 : vector<2x128xf32>, i32 -> vector<2x128xf32>
    %191 = arith.mulf %189, %190 : vector<2x128xf32>
    %192 = vector.extract_strided_slice %191 {offsets = [0, 32], sizes = [2, 32], strides = [1, 1]} : vector<2x128xf32> to vector<2x32xf32>
    %193 = vector.extract_strided_slice %189 {offsets = [0, 0], sizes = [2, 32], strides = [1, 1]} : vector<2x128xf32> to vector<2x32xf32>
    %194 = arith.mulf %193, %157 : vector<2x32xf32>
    %195 = arith.addf %194, %192 : vector<2x32xf32>
    %196 = vector.extract_strided_slice %190 {offsets = [0, 0], sizes = [2, 32], strides = [1, 1]} : vector<2x128xf32> to vector<2x32xf32>
    %197 = math.tanh %195 : vector<2x32xf32>
    %198 = arith.mulf %196, %197 : vector<2x32xf32>
    %199 = arith.truncf %198 : vector<2x32xf32> to vector<2x32xbf16>
    %cst_34 = arith.constant dense<0.000000e+00> : vector<2x128xf32>
    %200 = tpu.matmul %199, %7, %cst_34 {dimension_numbers = #tpu.dot_dimension_numbers<[1], [0], [0], [1], [0, 0, 1, 1], [], []>} : vector<2x32xbf16>, vector<32x128xbf16>, vector<2x128xf32> -> vector<2x128xf32>
    %201 = arith.addf %200, %180 : vector<2x128xf32>
    %202 = vector.broadcast %3 : vector<1x128xf32> to vector<2x128xf32>
    %203 = arith.addf %201, %202 : vector<2x128xf32>
    %204 = arith.mulf %203, %22 : vector<2x128xf32>
    %205 = math.tanh %204 : vector<2x128xf32>
    %206 = arith.mulf %205, %22 : vector<2x128xf32>
    %207 = arith.addf %206, %25 : vector<2x128xf32>
    %c64_i32_35 = arith.constant 64 : i32
    %208 = tpu.dynamic_rotate %207 by %c64_i32_35 dim 1 : vector<2x128xf32>, i32 -> vector<2x128xf32>
    %209 = arith.mulf %207, %208 : vector<2x128xf32>
    %210 = vector.extract_strided_slice %209 {offsets = [0, 32], sizes = [2, 32], strides = [1, 1]} : vector<2x128xf32> to vector<2x32xf32>
    %211 = vector.extract_strided_slice %207 {offsets = [0, 0], sizes = [2, 32], strides = [1, 1]} : vector<2x128xf32> to vector<2x32xf32>
    %212 = arith.mulf %211, %175 : vector<2x32xf32>
    %213 = arith.addf %212, %210 : vector<2x32xf32>
    %214 = vector.extract_strided_slice %208 {offsets = [0, 0], sizes = [2, 32], strides = [1, 1]} : vector<2x128xf32> to vector<2x32xf32>
    %215 = math.tanh %213 : vector<2x32xf32>
    %216 = arith.mulf %214, %215 : vector<2x32xf32>
    %217 = arith.truncf %216 : vector<2x32xf32> to vector<2x32xbf16>
    %cst_36 = arith.constant dense<0.000000e+00> : vector<2x128xf32>
    %218 = tpu.matmul %217, %8, %cst_36 {dimension_numbers = #tpu.dot_dimension_numbers<[1], [0], [0], [1], [0, 0, 1, 1], [], []>} : vector<2x32xbf16>, vector<32x128xbf16>, vector<2x128xf32> -> vector<2x128xf32>
    %219 = vector.extract_strided_slice %16 {offsets = [5, 0, 0], sizes = [1, 2, 128], strides = [1, 1, 1]} : vector<8x2x128xf32> to vector<1x2x128xf32>
    %220 = vector.shape_cast %219 : vector<1x2x128xf32> to vector<2x128xf32>
    %221 = arith.truncf %198 : vector<2x32xf32> to vector<2x32xbf16>
    %cst_37 = arith.constant dense<0.000000e+00> : vector<2x128xf32>
    %222 = tpu.matmul %221, %6, %cst_37 {dimension_numbers = #tpu.dot_dimension_numbers<[1], [0], [0], [1], [0, 0, 1, 1], [], []>} : vector<2x32xbf16>, vector<32x128xbf16>, vector<2x128xf32> -> vector<2x128xf32>
    %223 = arith.addf %220, %222 : vector<2x128xf32>
    %224 = arith.mulf %223, %22 : vector<2x128xf32>
    %225 = math.tanh %224 : vector<2x128xf32>
    %226 = arith.mulf %225, %22 : vector<2x128xf32>
    %227 = arith.addf %226, %25 : vector<2x128xf32>
    %c64_i32_38 = arith.constant 64 : i32
    %228 = tpu.dynamic_rotate %227 by %c64_i32_38 dim 1 : vector<2x128xf32>, i32 -> vector<2x128xf32>
    %229 = arith.mulf %227, %228 : vector<2x128xf32>
    %230 = vector.extract_strided_slice %229 {offsets = [0, 32], sizes = [2, 32], strides = [1, 1]} : vector<2x128xf32> to vector<2x32xf32>
    %231 = vector.extract_strided_slice %227 {offsets = [0, 0], sizes = [2, 32], strides = [1, 1]} : vector<2x128xf32> to vector<2x32xf32>
    %232 = arith.mulf %231, %195 : vector<2x32xf32>
    %233 = arith.addf %232, %230 : vector<2x32xf32>
    %234 = vector.extract_strided_slice %228 {offsets = [0, 0], sizes = [2, 32], strides = [1, 1]} : vector<2x128xf32> to vector<2x32xf32>
    %235 = math.tanh %233 : vector<2x32xf32>
    %236 = arith.mulf %234, %235 : vector<2x32xf32>
    %237 = arith.truncf %236 : vector<2x32xf32> to vector<2x32xbf16>
    %cst_39 = arith.constant dense<0.000000e+00> : vector<2x128xf32>
    %238 = tpu.matmul %237, %7, %cst_39 {dimension_numbers = #tpu.dot_dimension_numbers<[1], [0], [0], [1], [0, 0, 1, 1], [], []>} : vector<2x32xbf16>, vector<32x128xbf16>, vector<2x128xf32> -> vector<2x128xf32>
    %239 = arith.addf %238, %218 : vector<2x128xf32>
    %240 = vector.broadcast %3 : vector<1x128xf32> to vector<2x128xf32>
    %241 = arith.addf %239, %240 : vector<2x128xf32>
    %242 = arith.mulf %241, %22 : vector<2x128xf32>
    %243 = math.tanh %242 : vector<2x128xf32>
    %244 = arith.mulf %243, %22 : vector<2x128xf32>
    %245 = arith.addf %244, %25 : vector<2x128xf32>
    %c64_i32_40 = arith.constant 64 : i32
    %246 = tpu.dynamic_rotate %245 by %c64_i32_40 dim 1 : vector<2x128xf32>, i32 -> vector<2x128xf32>
    %247 = arith.mulf %245, %246 : vector<2x128xf32>
    %248 = vector.extract_strided_slice %247 {offsets = [0, 32], sizes = [2, 32], strides = [1, 1]} : vector<2x128xf32> to vector<2x32xf32>
    %249 = vector.extract_strided_slice %245 {offsets = [0, 0], sizes = [2, 32], strides = [1, 1]} : vector<2x128xf32> to vector<2x32xf32>
    %250 = arith.mulf %249, %213 : vector<2x32xf32>
    %251 = arith.addf %250, %248 : vector<2x32xf32>
    %252 = vector.extract_strided_slice %246 {offsets = [0, 0], sizes = [2, 32], strides = [1, 1]} : vector<2x128xf32> to vector<2x32xf32>
    %253 = math.tanh %251 : vector<2x32xf32>
    %254 = arith.mulf %252, %253 : vector<2x32xf32>
    %255 = arith.truncf %254 : vector<2x32xf32> to vector<2x32xbf16>
    %cst_41 = arith.constant dense<0.000000e+00> : vector<2x128xf32>
    %256 = tpu.matmul %255, %8, %cst_41 {dimension_numbers = #tpu.dot_dimension_numbers<[1], [0], [0], [1], [0, 0, 1, 1], [], []>} : vector<2x32xbf16>, vector<32x128xbf16>, vector<2x128xf32> -> vector<2x128xf32>
    %257 = vector.extract_strided_slice %16 {offsets = [6, 0, 0], sizes = [1, 2, 128], strides = [1, 1, 1]} : vector<8x2x128xf32> to vector<1x2x128xf32>
    %258 = vector.shape_cast %257 : vector<1x2x128xf32> to vector<2x128xf32>
    %259 = arith.truncf %236 : vector<2x32xf32> to vector<2x32xbf16>
    %cst_42 = arith.constant dense<0.000000e+00> : vector<2x128xf32>
    %260 = tpu.matmul %259, %6, %cst_42 {dimension_numbers = #tpu.dot_dimension_numbers<[1], [0], [0], [1], [0, 0, 1, 1], [], []>} : vector<2x32xbf16>, vector<32x128xbf16>, vector<2x128xf32> -> vector<2x128xf32>
    %261 = arith.addf %258, %260 : vector<2x128xf32>
    %262 = arith.mulf %261, %22 : vector<2x128xf32>
    %263 = math.tanh %262 : vector<2x128xf32>
    %264 = arith.mulf %263, %22 : vector<2x128xf32>
    %265 = arith.addf %264, %25 : vector<2x128xf32>
    %c64_i32_43 = arith.constant 64 : i32
    %266 = tpu.dynamic_rotate %265 by %c64_i32_43 dim 1 : vector<2x128xf32>, i32 -> vector<2x128xf32>
    %267 = arith.mulf %265, %266 : vector<2x128xf32>
    %268 = vector.extract_strided_slice %267 {offsets = [0, 32], sizes = [2, 32], strides = [1, 1]} : vector<2x128xf32> to vector<2x32xf32>
    %269 = vector.extract_strided_slice %265 {offsets = [0, 0], sizes = [2, 32], strides = [1, 1]} : vector<2x128xf32> to vector<2x32xf32>
    %270 = arith.mulf %269, %233 : vector<2x32xf32>
    %271 = arith.addf %270, %268 : vector<2x32xf32>
    %272 = vector.extract_strided_slice %266 {offsets = [0, 0], sizes = [2, 32], strides = [1, 1]} : vector<2x128xf32> to vector<2x32xf32>
    %273 = math.tanh %271 : vector<2x32xf32>
    %274 = arith.mulf %272, %273 : vector<2x32xf32>
    %275 = arith.truncf %274 : vector<2x32xf32> to vector<2x32xbf16>
    %cst_44 = arith.constant dense<0.000000e+00> : vector<2x128xf32>
    %276 = tpu.matmul %275, %7, %cst_44 {dimension_numbers = #tpu.dot_dimension_numbers<[1], [0], [0], [1], [0, 0, 1, 1], [], []>} : vector<2x32xbf16>, vector<32x128xbf16>, vector<2x128xf32> -> vector<2x128xf32>
    %277 = arith.addf %276, %256 : vector<2x128xf32>
    %278 = vector.broadcast %3 : vector<1x128xf32> to vector<2x128xf32>
    %279 = arith.addf %277, %278 : vector<2x128xf32>
    %280 = arith.mulf %279, %22 : vector<2x128xf32>
    %281 = math.tanh %280 : vector<2x128xf32>
    %282 = arith.mulf %281, %22 : vector<2x128xf32>
    %283 = arith.addf %282, %25 : vector<2x128xf32>
    %c64_i32_45 = arith.constant 64 : i32
    %284 = tpu.dynamic_rotate %283 by %c64_i32_45 dim 1 : vector<2x128xf32>, i32 -> vector<2x128xf32>
    %285 = arith.mulf %283, %284 : vector<2x128xf32>
    %286 = vector.extract_strided_slice %285 {offsets = [0, 32], sizes = [2, 32], strides = [1, 1]} : vector<2x128xf32> to vector<2x32xf32>
    %287 = vector.extract_strided_slice %283 {offsets = [0, 0], sizes = [2, 32], strides = [1, 1]} : vector<2x128xf32> to vector<2x32xf32>
    %288 = arith.mulf %287, %251 : vector<2x32xf32>
    %289 = arith.addf %288, %286 : vector<2x32xf32>
    %290 = vector.extract_strided_slice %284 {offsets = [0, 0], sizes = [2, 32], strides = [1, 1]} : vector<2x128xf32> to vector<2x32xf32>
    %291 = math.tanh %289 : vector<2x32xf32>
    %292 = arith.mulf %290, %291 : vector<2x32xf32>
    %293 = arith.truncf %292 : vector<2x32xf32> to vector<2x32xbf16>
    %cst_46 = arith.constant dense<0.000000e+00> : vector<2x128xf32>
    %294 = tpu.matmul %293, %8, %cst_46 {dimension_numbers = #tpu.dot_dimension_numbers<[1], [0], [0], [1], [0, 0, 1, 1], [], []>} : vector<2x32xbf16>, vector<32x128xbf16>, vector<2x128xf32> -> vector<2x128xf32>
    %295 = vector.extract_strided_slice %16 {offsets = [7, 0, 0], sizes = [1, 2, 128], strides = [1, 1, 1]} : vector<8x2x128xf32> to vector<1x2x128xf32>
    %296 = vector.shape_cast %295 : vector<1x2x128xf32> to vector<2x128xf32>
    %297 = arith.truncf %274 : vector<2x32xf32> to vector<2x32xbf16>
    %cst_47 = arith.constant dense<0.000000e+00> : vector<2x128xf32>
    %298 = tpu.matmul %297, %6, %cst_47 {dimension_numbers = #tpu.dot_dimension_numbers<[1], [0], [0], [1], [0, 0, 1, 1], [], []>} : vector<2x32xbf16>, vector<32x128xbf16>, vector<2x128xf32> -> vector<2x128xf32>
    %299 = arith.addf %296, %298 : vector<2x128xf32>
    %300 = arith.mulf %299, %22 : vector<2x128xf32>
    %301 = math.tanh %300 : vector<2x128xf32>
    %302 = arith.mulf %301, %22 : vector<2x128xf32>
    %303 = arith.addf %302, %25 : vector<2x128xf32>
    %c64_i32_48 = arith.constant 64 : i32
    %304 = tpu.dynamic_rotate %303 by %c64_i32_48 dim 1 : vector<2x128xf32>, i32 -> vector<2x128xf32>
    %305 = arith.mulf %303, %304 : vector<2x128xf32>
    %306 = vector.extract_strided_slice %305 {offsets = [0, 32], sizes = [2, 32], strides = [1, 1]} : vector<2x128xf32> to vector<2x32xf32>
    %307 = vector.extract_strided_slice %303 {offsets = [0, 0], sizes = [2, 32], strides = [1, 1]} : vector<2x128xf32> to vector<2x32xf32>
    %308 = arith.mulf %307, %271 : vector<2x32xf32>
    %309 = arith.addf %308, %306 : vector<2x32xf32>
    %310 = vector.extract_strided_slice %304 {offsets = [0, 0], sizes = [2, 32], strides = [1, 1]} : vector<2x128xf32> to vector<2x32xf32>
    %311 = math.tanh %309 : vector<2x32xf32>
    %312 = arith.mulf %310, %311 : vector<2x32xf32>
    %313 = arith.truncf %312 : vector<2x32xf32> to vector<2x32xbf16>
    %cst_49 = arith.constant dense<0.000000e+00> : vector<2x128xf32>
    %314 = tpu.matmul %313, %7, %cst_49 {dimension_numbers = #tpu.dot_dimension_numbers<[1], [0], [0], [1], [0, 0, 1, 1], [], []>} : vector<2x32xbf16>, vector<32x128xbf16>, vector<2x128xf32> -> vector<2x128xf32>
    %315 = arith.addf %314, %294 : vector<2x128xf32>
    %316 = vector.broadcast %3 : vector<1x128xf32> to vector<2x128xf32>
    %317 = arith.addf %315, %316 : vector<2x128xf32>
    %318 = arith.mulf %317, %22 : vector<2x128xf32>
    %319 = math.tanh %318 : vector<2x128xf32>
    %320 = arith.mulf %319, %22 : vector<2x128xf32>
    %321 = arith.addf %320, %25 : vector<2x128xf32>
    %c64_i32_50 = arith.constant 64 : i32
    %322 = tpu.dynamic_rotate %321 by %c64_i32_50 dim 1 : vector<2x128xf32>, i32 -> vector<2x128xf32>
    %323 = arith.mulf %321, %322 : vector<2x128xf32>
    %324 = vector.extract_strided_slice %323 {offsets = [0, 32], sizes = [2, 32], strides = [1, 1]} : vector<2x128xf32> to vector<2x32xf32>
    %325 = vector.extract_strided_slice %321 {offsets = [0, 0], sizes = [2, 32], strides = [1, 1]} : vector<2x128xf32> to vector<2x32xf32>
    %326 = arith.mulf %325, %289 : vector<2x32xf32>
    %327 = arith.addf %326, %324 : vector<2x32xf32>
    %328 = vector.extract_strided_slice %322 {offsets = [0, 0], sizes = [2, 32], strides = [1, 1]} : vector<2x128xf32> to vector<2x32xf32>
    %329 = math.tanh %327 : vector<2x32xf32>
    %330 = arith.mulf %328, %329 : vector<2x32xf32>
    %331 = vector.broadcast %4 : vector<1x32xf32> to vector<2x32xf32>
    %332 = arith.mulf %330, %331 : vector<2x32xf32>
    %cst_51 = arith.constant dense<0.000000e+00> : vector<2xf32>
    %333 = vector.multi_reduction <add>, %332, %cst_51 [1] : vector<2x32xf32> to vector<2xf32>
    %334 = vector.shape_cast %333 : vector<2xf32> to vector<2x1xf32>
    %335 = vector.broadcast %5 : vector<1x1xf32> to vector<2x1xf32>
    %336 = arith.addf %334, %335 : vector<2x1xf32>
    %c0_52 = arith.constant 0 : index
    %c0_53 = arith.constant 0 : index
    %337 = vector.load %arg3[%c0_52, %c0_53] : memref<2x1xf32, #tpu.memory_space<vmem>>, vector<2x1xf32>
    tpu.vector_store %arg3[%c0_52, %c0_53], %336 {strides = array<i32>} : memref<2x1xf32, #tpu.memory_space<vmem>>, vector<2x1xf32>,
    return
  }
}

</mosaic_0001>

<llo_original>
// kernel: tpu_custom_call.1
$region0: #{tpu_custom_call.1}
  #allocation0 [shape = 'u32[]', space=smem, size = 0x4, offset = 0x4, fixed_abs, tag = 'smem constant byte address 0x4 - core index']
  #allocation1 [shape = 'u32[144,128]{1,0:T(1,128)}', space=vmem, size = 0x12000, scoped, tag = 'internal scratch']
  %s0 = inlined_call_operand.vmem [shape: f32[8,2,1], index: 0, kind: input, shape index: {}]
  %s1 = inlined_call_operand.vmem [shape: f32[8,128], index: 1, kind: input, shape index: {}]
  %s2 = inlined_call_operand.hbm [shape: bf16[96,128], index: 2, kind: input, shape index: {}]
  %s3 = inlined_call_operand.vmem [shape: f32[2,1], index: 3, kind: output, shape index: {}]
  %s4 = sld [smem:[#allocation0]]
  $region26: #{tpu_custom_call.1} parent=0
    _
  %s6 = ssub.s32 1, %s4
  %s7 = scalar_select 0, %s6, %s4
  $region1: #{tpu_custom_call.1} parent=0
    #allocation2 [shape = 'u8[24576]{0}', space=vmem, size = 0x6000, scoped, tag = 'input window, operand 2, single buffered']
    #allocation3 [shape = 's32[1]{0}', space=sflag, size = 0x4, scoped, tag = 'scoped memory for tpu_custom_call.1']
    %8 = vsyncpa [#allocation3], 0
    // Predicated region
    $region2: #{tpu_custom_call.1} parent=1 // pred_check
      _
    $region3: #{tpu_custom_call.1} parent=1 // pred_check_branch
      %10 = sbr.rel (0) target = $region5
    $region4: #{tpu_custom_call.1} parent=1 // pred_region
      _
    $region5: #{tpu_custom_call.1} parent=1 // pred_fallthru
      _
    // Predicated region
    $region6: #{tpu_custom_call.1} parent=1 // pred_check
      _
    $region7: #{tpu_custom_call.1} parent=1 // pred_check_branch
      %12 = sbr.rel (0) target = $region9
    $region8: #{tpu_custom_call.1} parent=1 // pred_region
      _
    $region9: #{tpu_custom_call.1} parent=1 // pred_fallthru
      _
    // Predicated region
    $region10: #{tpu_custom_call.1} parent=1 // pred_check
      _
    $region11: #{tpu_custom_call.1} parent=1 // pred_check_branch
      %14 = sbr.rel (0) target = $region13
    $region12: #{tpu_custom_call.1} parent=1 // pred_region
      %s16 = ssub.s32 768, 768
      %17 = vsyncadd [#allocation3], %s16
      %s18 = sshll.u32 [#allocation2], 4
      %s19 = int_to_ptr.vmem [resolvable:$true] %s18
      %24 = dma.hbm_to_vmem [thread:$0]  %s2, 768, %s19, [#allocation3], 64, 64, 4
    $region13: #{tpu_custom_call.1} parent=1 // pred_fallthru
      _
    // Predicated region
    $region14: #{tpu_custom_call.1} parent=1 // pred_check
      _
    $region15: #{tpu_custom_call.1} parent=1 // pred_check_branch
      %26 = sbr.rel (0) target = $region17
    $region16: #{tpu_custom_call.1} parent=1 // pred_region
      %27 = dma.done [#allocation3], 768
    $region17: #{tpu_custom_call.1} parent=1 // pred_fallthru
      _
    %v29 = vld [vmem:[%s1] sm:$0xff]
    %v30 = vld [vmem:[#allocation2] sm:$0xf]
    %v31 = vld [vmem:[#allocation2 + $0x4] sm:$0xf]
    %v32 = vld [vmem:[#allocation2 + $0x8] sm:$0xf]
    %v33 = vld [vmem:[#allocation2 + $0xc] sm:$0xf]
    %v34 = vld [vmem:[#allocation2 + $0x10] sm:$0xf]
    %v35 = vld [vmem:[#allocation2 + $0x14] sm:$0xf]
    %v36 = vld [vmem:[#allocation2 + $0x18] sm:$0xf]
    %v37 = vld [vmem:[#allocation2 + $0x1c] sm:$0xf]
    %v38 = vld [vmem:[#allocation2 + $0x20] sm:$0xf]
    %v39 = vld [vmem:[#allocation2 + $0x24] sm:$0xf]
    %v40 = vld [vmem:[#allocation2 + $0x28] sm:$0xf]
    %v41 = vld [vmem:[#allocation2 + $0x2c] sm:$0xf]
    %v42 = vld [vmem:[%s0] sm:$0x3]
    %v43 = vld [vmem:[%s0 + $0x2] sm:$0x3]
    %v44 = vld [vmem:[%s0 + $0x4] sm:$0x3]
    %v45 = vld [vmem:[%s0 + $0x6] sm:$0x3]
    %v46 = vld [vmem:[%s0 + $0x8] sm:$0x3]
    %v47 = vld [vmem:[%s0 + $0xa] sm:$0x3]
    %v48 = vld [vmem:[%s0 + $0xc] sm:$0x3]
    %v49 = vld [vmem:[%s0 + $0xe] sm:$0x3]
    %51 = vset.pattern.permute.xlu0 0
    %52 = vperm.xlu0 %51, %v42
    %v53 = vpop.permute.xlu0 %52
    %56 = vset.pattern.permute.xlu0 0
    %57 = vperm.xlu0 %56, %v43
    %v58 = vpop.permute.xlu0 %57
    %61 = vset.pattern.permute.xlu0 0
    %62 = vperm.xlu0 %61, %v44
    %v63 = vpop.permute.xlu0 %62
    %66 = vset.pattern.permute.xlu0 0
    %67 = vperm.xlu0 %66, %v45
    %v68 = vpop.permute.xlu0 %67
    %71 = vset.pattern.permute.xlu0 0
    %72 = vperm.xlu0 %71, %v46
    %v73 = vpop.permute.xlu0 %72
    %76 = vset.pattern.permute.xlu0 0
    %77 = vperm.xlu0 %76, %v47
    %v78 = vpop.permute.xlu0 %77
    %81 = vset.pattern.permute.xlu0 0
    %82 = vperm.xlu0 %81, %v48
    %v83 = vpop.permute.xlu0 %82
    %86 = vset.pattern.permute.xlu0 0
    %87 = vperm.xlu0 %86, %v49
    %v88 = vpop.permute.xlu0 %87
    %v90 = vlaneseq
    %v91 = vshrl.u32 %v90, 7
    %v92 = vsub.s32 0, %v91
    %v93 = vrot.slane %v29, %v92
    %v94 = vmul.f32 %v53, %v93
    %v95 = vmul.f32 %v58, %v93
    %v96 = vmul.f32 %v63, %v93
    %v97 = vmul.f32 %v68, %v93
    %v98 = vmul.f32 %v73, %v93
    %v99 = vmul.f32 %v78, %v93
    %v100 = vmul.f32 %v83, %v93
    %v101 = vmul.f32 %v88, %v93
    %v102 = vlaneseq
    %v103 = vshrl.u32 %v102, 7
    %v104 = vsub.s32 1, %v103
    %v105 = vrot.slane %v29, %v104
    %v106 = vadd.f32 %v94, %v105
    %v107 = vadd.f32 %v95, %v105
    %v108 = vadd.f32 %v96, %v105
    %v109 = vadd.f32 %v97, %v105
    %v110 = vadd.f32 %v98, %v105
    %v111 = vadd.f32 %v99, %v105
    %v112 = vadd.f32 %v100, %v105
    %v113 = vadd.f32 %v101, %v105
    %v114 = vlaneseq
    %v115 = vand.u32 %v114, 127
    %vm116 = vcmp.ge.s32.totalorder %v115, 96
    %v117 = vsel %vm116, 1.0, 0.5
    %v118 = vsel %vm116, 0.0, 0.5
    %v123 = vunpack.c.l.b16 %v38
    %v124 = vunpack.c.l.b16 %v39
    %v125 = vunpack.c.l.b16 %v40
    %v126 = vunpack.c.l.b16 %v41
    %v127 = vpack.c.b16 %v124, %v123
    %v128 = vpack.c.b16 %v126, %v125
    %vm131 = vcmask 261120
    %v133 = vsel %vm131, 0, 0
    %135 = vmatprep.subr.bf16.mxu0 0
    %136 = vmatpush1.bf16.msra.mxu0 %v127
    %137 = vmatprep.subr.bf16.mxu0 0
    %138 = vmatpush1.bf16.msra.mxu0 %v128
    %139 = vmatprep.subr.bf16.mxu0 0
    %140 = vmatpush1.bf16.msra.mxu0 0
    %141 = vmatprep.subr.bf16.mxu0 0
    %142 = vmatpush1.bf16.msra.mxu0 0
    %143 = vmatprep.subr.bf16.mxu0 0
    %144 = vmatpush1.bf16.msra.mxu0 0
    %145 = vmatprep.subr.bf16.mxu0 0
    %146 = vmatpush1.bf16.msra.mxu0 0
    %147 = vmatprep.subr.bf16.mxu0 0
    %148 = vmatpush1.bf16.msra.mxu0 0
    %149 = vmatprep.subr.bf16.mxu0 0
    %150 = vmatpush1.bf16.msra.mxu0 0
    %151 = vmatprep.subr.bf16.mxu0 0
    %152 = vmatpush1.bf16.msra.mxu0 0
    %153 = vmatprep.subr.bf16.mxu0 0
    %154 = vmatpush1.bf16.msra.mxu0 0
    %155 = vmatprep.subr.bf16.mxu0 0
    %156 = vmatpush1.bf16.msra.mxu0 0
    %157 = vmatprep.subr.bf16.mxu0 0
    %158 = vmatpush1.bf16.msra.mxu0 0
    %159 = vmatprep.subr.bf16.mxu0 0
    %160 = vmatpush1.bf16.msra.mxu0 0
    %161 = vmatprep.subr.bf16.mxu0 0
    %162 = vmatpush1.bf16.msra.mxu0 0
    %163 = vmatprep.subr.bf16.mxu0 0
    %164 = vmatpush1.bf16.msra.mxu0 0
    %165 = vmatprep.subr.bf16.mxu0 0
    %166 = vmatpush1.bf16.msra.mxu0 0
    %167 = vmatprep.mubr.bf16.mxu0 0
    %168 = vmatmul.mubr.bf16.gmra.mrb[0].mxu0 %v133
    %v169 = vpop.f32.mrb[0].mxu0
    %v170 = vadd.f32 0.0, %v169
    %v171 = vpop.f32.mrb[0].mxu0
    %v172 = vpop.f32.mrb[0].mxu0
    %v173 = vpop.f32.mrb[0].mxu0
    %174 = vdwg.mxu0
    %v179 = vunpack.c.l.b16 %v30
    %v180 = vunpack.c.l.b16 %v31
    %v181 = vunpack.c.l.b16 %v32
    %v182 = vunpack.c.l.b16 %v33
    %v183 = vpack.c.b16 %v180, %v179
    %v184 = vpack.c.b16 %v182, %v181
    %187 = vmatprep.subr.bf16.mxu0 0
    %188 = vmatpush1.bf16.msra.mxu0 %v183
    %189 = vmatprep.subr.bf16.mxu0 0
    %190 = vmatpush1.bf16.msra.mxu0 %v184
    %191 = vmatprep.subr.bf16.mxu0 0
    %192 = vmatpush1.bf16.msra.mxu0 0
    %193 = vmatprep.subr.bf16.mxu0 0
    %194 = vmatpush1.bf16.msra.mxu0 0
    %195 = vmatprep.subr.bf16.mxu0 0
    %196 = vmatpush1.bf16.msra.mxu0 0
    %197 = vmatprep.subr.bf16.mxu0 0
    %198 = vmatpush1.bf16.msra.mxu0 0
    %199 = vmatprep.subr.bf16.mxu0 0
    %200 = vmatpush1.bf16.msra.mxu0 0
    %201 = vmatprep.subr.bf16.mxu0 0
    %202 = vmatpush1.bf16.msra.mxu0 0
    %203 = vmatprep.subr.bf16.mxu0 0
    %204 = vmatpush1.bf16.msra.mxu0 0
    %205 = vmatprep.subr.bf16.mxu0 0
    %206 = vmatpush1.bf16.msra.mxu0 0
    %207 = vmatprep.subr.bf16.mxu0 0
    %208 = vmatpush1.bf16.msra.mxu0 0
    %209 = vmatprep.subr.bf16.mxu0 0
    %210 = vmatpush1.bf16.msra.mxu0 0
    %211 = vmatprep.subr.bf16.mxu0 0
    %212 = vmatpush1.bf16.msra.mxu0 0
    %213 = vmatprep.subr.bf16.mxu0 0
    %214 = vmatpush1.bf16.msra.mxu0 0
    %215 = vmatprep.subr.bf16.mxu0 0
    %216 = vmatpush1.bf16.msra.mxu0 0
    %217 = vmatprep.subr.bf16.mxu0 0
    %218 = vmatpush1.bf16.msra.mxu0 0
    %219 = vmatprep.mubr.bf16.mxu0 0
    %220 = vmatmul.mubr.bf16.gmra.mrb[0].mxu0 %v133
    %v221 = vpop.f32.mrb[0].mxu0
    %v222 = vadd.f32 0.0, %v221
    %v223 = vpop.f32.mrb[0].mxu0
    %v224 = vpop.f32.mrb[0].mxu0
    %v225 = vpop.f32.mrb[0].mxu0
    %226 = vdwg.mxu0
    %v227 = vadd.f32 %v106, %v222
    %v228 = vmul.f32 %v227, %v117
    %v229 = vtanh.pop %v228
    %v230 = vmul.f32 %v229, %v117
    %v231 = vadd.f32 %v230, %v118
    %232 = vrot.lane.b32.xlu0 %v231, 64
    %v233 = vpop.permute.xlu0 %232
    %v234 = vmul.f32 %v231, %v233
    %v235 = vmul.f32 %v231, 0.0
    %237 = vrot.lane.b32.xlu0 %v234, 96
    %v238 = vpop.permute.xlu0 %237
    %v240 = vadd.f32 %v235, %v238
    %v241 = vtanh.pop %v240
    %v242 = vmul.f32 %v233, %v241
    %v243 = vpack.c.bf16 %v242, %v242
    %v248 = vunpack.c.l.b16 %v34
    %v249 = vunpack.c.l.b16 %v35
    %v250 = vunpack.c.l.b16 %v36
    %v251 = vunpack.c.l.b16 %v37
    %v252 = vpack.c.b16 %v249, %v248
    %v253 = vpack.c.b16 %v251, %v250
    %v257 = vsel %vm131, %v243, 0
    %259 = vmatprep.subr.bf16.mxu0 0
    %260 = vmatpush1.bf16.msra.mxu0 %v252
    %261 = vmatprep.subr.bf16.mxu0 0
    %262 = vmatpush1.bf16.msra.mxu0 %v253
    %263 = vmatprep.subr.bf16.mxu0 0
    %264 = vmatpush1.bf16.msra.mxu0 0
    %265 = vmatprep.subr.bf16.mxu0 0
    %266 = vmatpush1.bf16.msra.mxu0 0
    %267 = vmatprep.subr.bf16.mxu0 0
    %268 = vmatpush1.bf16.msra.mxu0 0
    %269 = vmatprep.subr.bf16.mxu0 0
    %270 = vmatpush1.bf16.msra.mxu0 0
    %271 = vmatprep.subr.bf16.mxu0 0
    %272 = vmatpush1.bf16.msra.mxu0 0
    %273 = vmatprep.subr.bf16.mxu0 0
    %274 = vmatpush1.bf16.msra.mxu0 0
    %275 = vmatprep.subr.bf16.mxu0 0
    %276 = vmatpush1.bf16.msra.mxu0 0
    %277 = vmatprep.subr.bf16.mxu0 0
    %278 = vmatpush1.bf16.msra.mxu0 0
    %279 = vmatprep.subr.bf16.mxu0 0
    %280 = vmatpush1.bf16.msra.mxu0 0
    %281 = vmatprep.subr.bf16.mxu0 0
    %282 = vmatpush1.bf16.msra.mxu0 0
    %283 = vmatprep.subr.bf16.mxu0 0
    %284 = vmatpush1.bf16.msra.mxu0 0
    %285 = vmatprep.subr.bf16.mxu0 0
    %286 = vmatpush1.bf16.msra.mxu0 0
    %287 = vmatprep.subr.bf16.mxu0 0
    %288 = vmatpush1.bf16.msra.mxu0 0
    %289 = vmatprep.subr.bf16.mxu0 0
    %290 = vmatpush1.bf16.msra.mxu0 0
    %291 = vmatprep.mubr.bf16.mxu0 0
    %292 = vmatmul.mubr.bf16.gmra.mrb[0].mxu0 %v257
    %v293 = vpop.f32.mrb[0].mxu0
    %v294 = vadd.f32 %v170, %v293
    %v295 = vpop.f32.mrb[0].mxu0
    %v296 = vpop.f32.mrb[0].mxu0
    %v297 = vpop.f32.mrb[0].mxu0
    %298 = vdwg.mxu0
    %v299 = vlaneseq
    %v300 = vshrl.u32 %v299, 7
    %v301 = vsub.s32 2, %v300
    %v302 = vrot.slane %v29, %v301
    %v303 = vadd.f32 %v294, %v302
    %v304 = vmul.f32 %v303, %v117
    %v305 = vtanh.pop %v304
    %v306 = vmul.f32 %v305, %v117
    %v307 = vadd.f32 %v306, %v118
    %308 = vrot.lane.b32.xlu0 %v307, 64
    %v309 = vpop.permute.xlu0 %308
    %v310 = vmul.f32 %v307, %v309
    %v311 = vmul.f32 %v307, 0.0
    %313 = vrot.lane.b32.xlu0 %v310, 96
    %v314 = vpop.permute.xlu0 %313
    %v316 = vadd.f32 %v311, %v314
    %v317 = vtanh.pop %v316
    %v318 = vmul.f32 %v309, %v317
    %v319 = vpack.c.bf16 %v318, %v318
    %v321 = vsel %vm131, %v319, 0
    %323 = vmatprep.subr.bf16.mxu0 0
    %324 = vmatpush1.bf16.msra.mxu0 %v127
    %325 = vmatprep.subr.bf16.mxu0 0
    %326 = vmatpush1.bf16.msra.mxu0 %v128
    %327 = vmatprep.subr.bf16.mxu0 0
    %328 = vmatpush1.bf16.msra.mxu0 0
    %329 = vmatprep.subr.bf16.mxu0 0
    %330 = vmatpush1.bf16.msra.mxu0 0
    %331 = vmatprep.subr.bf16.mxu0 0
    %332 = vmatpush1.bf16.msra.mxu0 0
    %333 = vmatprep.subr.bf16.mxu0 0
    %334 = vmatpush1.bf16.msra.mxu0 0
    %335 = vmatprep.subr.bf16.mxu0 0
    %336 = vmatpush1.bf16.msra.mxu0 0
    %337 = vmatprep.subr.bf16.mxu0 0
    %338 = vmatpush1.bf16.msra.mxu0 0
    %339 = vmatprep.subr.bf16.mxu0 0
    %340 = vmatpush1.bf16.msra.mxu0 0
    %341 = vmatprep.subr.bf16.mxu0 0
    %342 = vmatpush1.bf16.msra.mxu0 0
    %343 = vmatprep.subr.bf16.mxu0 0
    %344 = vmatpush1.bf16.msra.mxu0 0
    %345 = vmatprep.subr.bf16.mxu0 0
    %346 = vmatpush1.bf16.msra.mxu0 0
    %347 = vmatprep.subr.bf16.mxu0 0
    %348 = vmatpush1.bf16.msra.mxu0 0
    %349 = vmatprep.subr.bf16.mxu0 0
    %350 = vmatpush1.bf16.msra.mxu0 0
    %351 = vmatprep.subr.bf16.mxu0 0
    %352 = vmatpush1.bf16.msra.mxu0 0
    %353 = vmatprep.subr.bf16.mxu0 0
    %354 = vmatpush1.bf16.msra.mxu0 0
    %355 = vmatprep.mubr.bf16.mxu0 0
    %356 = vmatmul.mubr.bf16.gmra.mrb[0].mxu0 %v321
    %v357 = vpop.f32.mrb[0].mxu0
    %v358 = vadd.f32 0.0, %v357
    %v359 = vpop.f32.mrb[0].mxu0
    %v360 = vpop.f32.mrb[0].mxu0
    %v361 = vpop.f32.mrb[0].mxu0
    %362 = vdwg.mxu0
    %363 = vmatprep.subr.bf16.mxu0 0
    %364 = vmatpush1.bf16.msra.mxu0 %v183
    %365 = vmatprep.subr.bf16.mxu0 0
    %366 = vmatpush1.bf16.msra.mxu0 %v184
    %367 = vmatprep.subr.bf16.mxu0 0
    %368 = vmatpush1.bf16.msra.mxu0 0
    %369 = vmatprep.subr.bf16.mxu0 0
    %370 = vmatpush1.bf16.msra.mxu0 0
    %371 = vmatprep.subr.bf16.mxu0 0
    %372 = vmatpush1.bf16.msra.mxu0 0
    %373 = vmatprep.subr.bf16.mxu0 0
    %374 = vmatpush1.bf16.msra.mxu0 0
    %375 = vmatprep.subr.bf16.mxu0 0
    %376 = vmatpush1.bf16.msra.mxu0 0
    %377 = vmatprep.subr.bf16.mxu0 0
    %378 = vmatpush1.bf16.msra.mxu0 0
    %379 = vmatprep.subr.bf16.mxu0 0
    %380 = vmatpush1.bf16.msra.mxu0 0
    %381 = vmatprep.subr.bf16.mxu0 0
    %382 = vmatpush1.bf16.msra.mxu0 0
    %383 = vmatprep.subr.bf16.mxu0 0
    %384 = vmatpush1.bf16.msra.mxu0 0
    %385 = vmatprep.subr.bf16.mxu0 0
    %386 = vmatpush1.bf16.msra.mxu0 0
    %387 = vmatprep.subr.bf16.mxu0 0
    %388 = vmatpush1.bf16.msra.mxu0 0
    %389 = vmatprep.subr.bf16.mxu0 0
    %390 = vmatpush1.bf16.msra.mxu0 0
    %391 = vmatprep.subr.bf16.mxu0 0
    %392 = vmatpush1.bf16.msra.mxu0 0
    %393 = vmatprep.subr.bf16.mxu0 0
    %394 = vmatpush1.bf16.msra.mxu0 0
    %395 = vmatprep.mubr.bf16.mxu0 0
    %396 = vmatmul.mubr.bf16.gmra.mrb[0].mxu0 %v257
    %v397 = vpop.f32.mrb[0].mxu0
    %v398 = vadd.f32 0.0, %v397
    %v399 = vpop.f32.mrb[0].mxu0
    %v400 = vpop.f32.mrb[0].mxu0
    %v401 = vpop.f32.mrb[0].mxu0
    %402 = vdwg.mxu0
    %v403 = vadd.f32 %v107, %v398
    %v404 = vmul.f32 %v403, %v117
    %v405 = vtanh.pop %v404
    %v406 = vmul.f32 %v405, %v117
    %v407 = vadd.f32 %v406, %v118
    %408 = vrot.lane.b32.xlu0 %v407, 64
    %v409 = vpop.permute.xlu0 %408
    %v410 = vmul.f32 %v407, %v409
    %v411 = vmul.f32 %v407, %v240
    %413 = vrot.lane.b32.xlu0 %v410, 96
    %v414 = vpop.permute.xlu0 %413
    %v416 = vadd.f32 %v411, %v414
    %v417 = vtanh.pop %v416
    %v418 = vmul.f32 %v409, %v417
    %v419 = vpack.c.bf16 %v418, %v418
    %v421 = vsel %vm131, %v419, 0
    %423 = vmatprep.subr.bf16.mxu0 0
    %424 = vmatpush1.bf16.msra.mxu0 %v252
    %425 = vmatprep.subr.bf16.mxu0 0
    %426 = vmatpush1.bf16.msra.mxu0 %v253
    %427 = vmatprep.subr.bf16.mxu0 0
    %428 = vmatpush1.bf16.msra.mxu0 0
    %429 = vmatprep.subr.bf16.mxu0 0
    %430 = vmatpush1.bf16.msra.mxu0 0
    %431 = vmatprep.subr.bf16.mxu0 0
    %432 = vmatpush1.bf16.msra.mxu0 0
    %433 = vmatprep.subr.bf16.mxu0 0
    %434 = vmatpush1.bf16.msra.mxu0 0
    %435 = vmatprep.subr.bf16.mxu0 0
    %436 = vmatpush1.bf16.msra.mxu0 0
    %437 = vmatprep.subr.bf16.mxu0 0
    %438 = vmatpush1.bf16.msra.mxu0 0
    %439 = vmatprep.subr.bf16.mxu0 0
    %440 = vmatpush1.bf16.msra.mxu0 0
    %441 = vmatprep.subr.bf16.mxu0 0
    %442 = vmatpush1.bf16.msra.mxu0 0
    %443 = vmatprep.subr.bf16.mxu0 0
    %444 = vmatpush1.bf16.msra.mxu0 0
    %445 = vmatprep.subr.bf16.mxu0 0
    %446 = vmatpush1.bf16.msra.mxu0 0
    %447 = vmatprep.subr.bf16.mxu0 0
    %448 = vmatpush1.bf16.msra.mxu0 0
    %449 = vmatprep.subr.bf16.mxu0 0
    %450 = vmatpush1.bf16.msra.mxu0 0
    %451 = vmatprep.subr.bf16.mxu0 0
    %452 = vmatpush1.bf16.msra.mxu0 0
    %453 = vmatprep.subr.bf16.mxu0 0
    %454 = vmatpush1.bf16.msra.mxu0 0
    %455 = vmatprep.mubr.bf16.mxu0 0
    %456 = vmatmul.mubr.bf16.gmra.mrb[0].mxu0 %v421
    %v457 = vpop.f32.mrb[0].mxu0
    %v458 = vadd.f32 %v358, %v457
    %v459 = vpop.f32.mrb[0].mxu0
    %v460 = vpop.f32.mrb[0].mxu0
    %v461 = vpop.f32.mrb[0].mxu0
    %462 = vdwg.mxu0
    %v463 = vadd.f32 %v458, %v302
    %v464 = vmul.f32 %v463, %v117
    %v465 = vtanh.pop %v464
    %v466 = vmul.f32 %v465, %v117
    %v467 = vadd.f32 %v466, %v118
    %468 = vrot.lane.b32.xlu0 %v467, 64
    %v469 = vpop.permute.xlu0 %468
    %v470 = vmul.f32 %v467, %v469
    %v471 = vmul.f32 %v467, %v316
    %473 = vrot.lane.b32.xlu0 %v470, 96
    %v474 = vpop.permute.xlu0 %473
    %v476 = vadd.f32 %v471, %v474
    %v477 = vtanh.pop %v476
    %v478 = vmul.f32 %v469, %v477
    %v479 = vpack.c.bf16 %v478, %v478
    %v481 = vsel %vm131, %v479, 0
    %483 = vmatprep.subr.bf16.mxu0 0
    %484 = vmatpush1.bf16.msra.mxu0 %v127
    %485 = vmatprep.subr.bf16.mxu0 0
    %486 = vmatpush1.bf16.msra.mxu0 %v128
    %487 = vmatprep.subr.bf16.mxu0 0
    %488 = vmatpush1.bf16.msra.mxu0 0
    %489 = vmatprep.subr.bf16.mxu0 0
    %490 = vmatpush1.bf16.msra.mxu0 0
    %491 = vmatprep.subr.bf16.mxu0 0
    %492 = vmatpush1.bf16.msra.mxu0 0
    %493 = vmatprep.subr.bf16.mxu0 0
    %494 = vmatpush1.bf16.msra.mxu0 0
    %495 = vmatprep.subr.bf16.mxu0 0
    %496 = vmatpush1.bf16.msra.mxu0 0
    %497 = vmatprep.subr.bf16.mxu0 0
    %498 = vmatpush1.bf16.msra.mxu0 0
    %499 = vmatprep.subr.bf16.mxu0 0
    %500 = vmatpush1.bf16.msra.mxu0 0
    %501 = vmatprep.subr.bf16.mxu0 0
    %502 = vmatpush1.bf16.msra.mxu0 0
    %503 = vmatprep.subr.bf16.mxu0 0
    %504 = vmatpush1.bf16.msra.mxu0 0
    %505 = vmatprep.subr.bf16.mxu0 0
    %506 = vmatpush1.bf16.msra.mxu0 0
    %507 = vmatprep.subr.bf16.mxu0 0
    %508 = vmatpush1.bf16.msra.mxu0 0
    %509 = vmatprep.subr.bf16.mxu0 0
    %510 = vmatpush1.bf16.msra.mxu0 0
    %511 = vmatprep.subr.bf16.mxu0 0
    %512 = vmatpush1.bf16.msra.mxu0 0
    %513 = vmatprep.subr.bf16.mxu0 0
    %514 = vmatpush1.bf16.msra.mxu0 0
    %515 = vmatprep.mubr.bf16.mxu0 0
    %516 = vmatmul.mubr.bf16.gmra.mrb[0].mxu0 %v481
    %v517 = vpop.f32.mrb[0].mxu0
    %v518 = vadd.f32 0.0, %v517
    %v519 = vpop.f32.mrb[0].mxu0
    %v520 = vpop.f32.mrb[0].mxu0
    %v521 = vpop.f32.mrb[0].mxu0
    %522 = vdwg.mxu0
    %523 = vmatprep.subr.bf16.mxu0 0
    %524 = vmatpush1.bf16.msra.mxu0 %v183
    %525 = vmatprep.subr.bf16.mxu0 0
    %526 = vmatpush1.bf16.msra.mxu0 %v184
    %527 = vmatprep.subr.bf16.mxu0 0
    %528 = vmatpush1.bf16.msra.mxu0 0
    %529 = vmatprep.subr.bf16.mxu0 0
    %530 = vmatpush1.bf16.msra.mxu0 0
    %531 = vmatprep.subr.bf16.mxu0 0
    %532 = vmatpush1.bf16.msra.mxu0 0
    %533 = vmatprep.subr.bf16.mxu0 0
    %534 = vmatpush1.bf16.msra.mxu0 0
    %535 = vmatprep.subr.bf16.mxu0 0
    %536 = vmatpush1.bf16.msra.mxu0 0
    %537 = vmatprep.subr.bf16.mxu0 0
    %538 = vmatpush1.bf16.msra.mxu0 0
    %539 = vmatprep.subr.bf16.mxu0 0
    %540 = vmatpush1.bf16.msra.mxu0 0
    %541 = vmatprep.subr.bf16.mxu0 0
    %542 = vmatpush1.bf16.msra.mxu0 0
    %543 = vmatprep.subr.bf16.mxu0 0
    %544 = vmatpush1.bf16.msra.mxu0 0
    %545 = vmatprep.subr.bf16.mxu0 0
    %546 = vmatpush1.bf16.msra.mxu0 0
    %547 = vmatprep.subr.bf16.mxu0 0
    %548 = vmatpush1.bf16.msra.mxu0 0
    %549 = vmatprep.subr.bf16.mxu0 0
    %550 = vmatpush1.bf16.msra.mxu0 0
    %551 = vmatprep.subr.bf16.mxu0 0
    %552 = vmatpush1.bf16.msra.mxu0 0
    %553 = vmatprep.subr.bf16.mxu0 0
    %554 = vmatpush1.bf16.msra.mxu0 0
    %555 = vmatprep.mubr.bf16.mxu0 0
    %556 = vmatmul.mubr.bf16.gmra.mrb[0].mxu0 %v421
    %v557 = vpop.f32.mrb[0].mxu0
    %v558 = vadd.f32 0.0, %v557
    %v559 = vpop.f32.mrb[0].mxu0
    %v560 = vpop.f32.mrb[0].mxu0
    %v561 = vpop.f32.mrb[0].mxu0
    %562 = vdwg.mxu0
    %v563 = vadd.f32 %v108, %v558
    %v564 = vmul.f32 %v563, %v117
    %v565 = vtanh.pop %v564
    %v566 = vmul.f32 %v565, %v117
    %v567 = vadd.f32 %v566, %v118
    %568 = vrot.lane.b32.xlu0 %v567, 64
    %v569 = vpop.permute.xlu0 %568
    %v570 = vmul.f32 %v567, %v569
    %v571 = vmul.f32 %v567, %v416
    %573 = vrot.lane.b32.xlu0 %v570, 96
    %v574 = vpop.permute.xlu0 %573
    %v576 = vadd.f32 %v571, %v574
    %v577 = vtanh.pop %v576
    %v578 = vmul.f32 %v569, %v577
    %v579 = vpack.c.bf16 %v578, %v578
    %v581 = vsel %vm131, %v579, 0
    %583 = vmatprep.subr.bf16.mxu0 0
    %584 = vmatpush1.bf16.msra.mxu0 %v252
    %585 = vmatprep.subr.bf16.mxu0 0
    %586 = vmatpush1.bf16.msra.mxu0 %v253
    %587 = vmatprep.subr.bf16.mxu0 0
    %588 = vmatpush1.bf16.msra.mxu0 0
    %589 = vmatprep.subr.bf16.mxu0 0
    %590 = vmatpush1.bf16.msra.mxu0 0
    %591 = vmatprep.subr.bf16.mxu0 0
    %592 = vmatpush1.bf16.msra.mxu0 0
    %593 = vmatprep.subr.bf16.mxu0 0
    %594 = vmatpush1.bf16.msra.mxu0 0
    %595 = vmatprep.subr.bf16.mxu0 0
    %596 = vmatpush1.bf16.msra.mxu0 0
    %597 = vmatprep.subr.bf16.mxu0 0
    %598 = vmatpush1.bf16.msra.mxu0 0
    %599 = vmatprep.subr.bf16.mxu0 0
    %600 = vmatpush1.bf16.msra.mxu0 0
    %601 = vmatprep.subr.bf16.mxu0 0
    %602 = vmatpush1.bf16.msra.mxu0 0
    %603 = vmatprep.subr.bf16.mxu0 0
    %604 = vmatpush1.bf16.msra.mxu0 0
    %605 = vmatprep.subr.bf16.mxu0 0
    %606 = vmatpush1.bf16.msra.mxu0 0
    %607 = vmatprep.subr.bf16.mxu0 0
    %608 = vmatpush1.bf16.msra.mxu0 0
    %609 = vmatprep.subr.bf16.mxu0 0
    %610 = vmatpush1.bf16.msra.mxu0 0
    %611 = vmatprep.subr.bf16.mxu0 0
    %612 = vmatpush1.bf16.msra.mxu0 0
    %613 = vmatprep.subr.bf16.mxu0 0
    %614 = vmatpush1.bf16.msra.mxu0 0
    %615 = vmatprep.mubr.bf16.mxu0 0
    %616 = vmatmul.mubr.bf16.gmra.mrb[0].mxu0 %v581
    %v617 = vpop.f32.mrb[0].mxu0
    %v618 = vadd.f32 %v518, %v617
    %v619 = vpop.f32.mrb[0].mxu0
    %v620 = vpop.f32.mrb[0].mxu0
    %v621 = vpop.f32.mrb[0].mxu0
    %622 = vdwg.mxu0
    %v623 = vadd.f32 %v618, %v302
    %v624 = vmul.f32 %v623, %v117
    %v625 = vtanh.pop %v624
    %v626 = vmul.f32 %v625, %v117
    %v627 = vadd.f32 %v626, %v118
    %628 = vrot.lane.b32.xlu0 %v627, 64
    %v629 = vpop.permute.xlu0 %628
    %v630 = vmul.f32 %v627, %v629
    %v631 = vmul.f32 %v627, %v476
    %633 = vrot.lane.b32.xlu0 %v630, 96
    %v634 = vpop.permute.xlu0 %633
    %v636 = vadd.f32 %v631, %v634
    %v637 = vtanh.pop %v636
    %v638 = vmul.f32 %v629, %v637
    %v639 = vpack.c.bf16 %v638, %v638
    %v641 = vsel %vm131, %v639, 0
    %643 = vmatprep.subr.bf16.mxu0 0
    %644 = vmatpush1.bf16.msra.mxu0 %v127
    %645 = vmatprep.subr.bf16.mxu0 0
    %646 = vmatpush1.bf16.msra.mxu0 %v128
    %647 = vmatprep.subr.bf16.mxu0 0
    %648 = vmatpush1.bf16.msra.mxu0 0
    %649 = vmatprep.subr.bf16.mxu0 0
    %650 = vmatpush1.bf16.msra.mxu0 0
    %651 = vmatprep.subr.bf16.mxu0 0
    %652 = vmatpush1.bf16.msra.mxu0 0
    %653 = vmatprep.subr.bf16.mxu0 0
    %654 = vmatpush1.bf16.msra.mxu0 0
    %655 = vmatprep.subr.bf16.mxu0 0
    %656 = vmatpush1.bf16.msra.mxu0 0
    %657 = vmatprep.subr.bf16.mxu0 0
    %658 = vmatpush1.bf16.msra.mxu0 0
    %659 = vmatprep.subr.bf16.mxu0 0
    %660 = vmatpush1.bf16.msra.mxu0 0
    %661 = vmatprep.subr.bf16.mxu0 0
    %662 = vmatpush1.bf16.msra.mxu0 0
    %663 = vmatprep.subr.bf16.mxu0 0
    %664 = vmatpush1.bf16.msra.mxu0 0
    %665 = vmatprep.subr.bf16.mxu0 0
    %666 = vmatpush1.bf16.msra.mxu0 0
    %667 = vmatprep.subr.bf16.mxu0 0
    %668 = vmatpush1.bf16.msra.mxu0 0
    %669 = vmatprep.subr.bf16.mxu0 0
    %670 = vmatpush1.bf16.msra.mxu0 0
    %671 = vmatprep.subr.bf16.mxu0 0
    %672 = vmatpush1.bf16.msra.mxu0 0
    %673 = vmatprep.subr.bf16.mxu0 0
    %674 = vmatpush1.bf16.msra.mxu0 0
    %675 = vmatprep.mubr.bf16.mxu0 0
    %676 = vmatmul.mubr.bf16.gmra.mrb[0].mxu0 %v641
    %v677 = vpop.f32.mrb[0].mxu0
    %v678 = vadd.f32 0.0, %v677
    %v679 = vpop.f32.mrb[0].mxu0
    %v680 = vpop.f32.mrb[0].mxu0
    %v681 = vpop.f32.mrb[0].mxu0
    %682 = vdwg.mxu0
    %683 = vmatprep.subr.bf16.mxu0 0
    %684 = vmatpush1.bf16.msra.mxu0 %v183
    %685 = vmatprep.subr.bf16.mxu0 0
    %686 = vmatpush1.bf16.msra.mxu0 %v184
    %687 = vmatprep.subr.bf16.mxu0 0
    %688 = vmatpush1.bf16.msra.mxu0 0
    %689 = vmatprep.subr.bf16.mxu0 0
    %690 = vmatpush1.bf16.msra.mxu0 0
    %691 = vmatprep.subr.bf16.mxu0 0
    %692 = vmatpush1.bf16.msra.mxu0 0
    %693 = vmatprep.subr.bf16.mxu0 0
    %694 = vmatpush1.bf16.msra.mxu0 0
    %695 = vmatprep.subr.bf16.mxu0 0
    %696 = vmatpush1.bf16.msra.mxu0 0
    %697 = vmatprep.subr.bf16.mxu0 0
    %698 = vmatpush1.bf16.msra.mxu0 0
    %699 = vmatprep.subr.bf16.mxu0 0
    %700 = vmatpush1.bf16.msra.mxu0 0
    %701 = vmatprep.subr.bf16.mxu0 0
    %702 = vmatpush1.bf16.msra.mxu0 0
    %703 = vmatprep.subr.bf16.mxu0 0
    %704 = vmatpush1.bf16.msra.mxu0 0
    %705 = vmatprep.subr.bf16.mxu0 0
    %706 = vmatpush1.bf16.msra.mxu0 0
    %707 = vmatprep.subr.bf16.mxu0 0
    %708 = vmatpush1.bf16.msra.mxu0 0
    %709 = vmatprep.subr.bf16.mxu0 0
    %710 = vmatpush1.bf16.msra.mxu0 0
    %711 = vmatprep.subr.bf16.mxu0 0
    %712 = vmatpush1.bf16.msra.mxu0 0
    %713 = vmatprep.subr.bf16.mxu0 0
    %714 = vmatpush1.bf16.msra.mxu0 0
    %715 = vmatprep.mubr.bf16.mxu0 0
    %716 = vmatmul.mubr.bf16.gmra.mrb[0].mxu0 %v581
    %v717 = vpop.f32.mrb[0].mxu0
    %v718 = vadd.f32 0.0, %v717
    %v719 = vpop.f32.mrb[0].mxu0
    %v720 = vpop.f32.mrb[0].mxu0
    %v721 = vpop.f32.mrb[0].mxu0
    %722 = vdwg.mxu0
    %v723 = vadd.f32 %v109, %v718
    %v724 = vmul.f32 %v723, %v117
    %v725 = vtanh.pop %v724
    %v726 = vmul.f32 %v725, %v117
    %v727 = vadd.f32 %v726, %v118
    %728 = vrot.lane.b32.xlu0 %v727, 64
    %v729 = vpop.permute.xlu0 %728
    %v730 = vmul.f32 %v727, %v729
    %v731 = vmul.f32 %v727, %v576
    %733 = vrot.lane.b32.xlu0 %v730, 96
    %v734 = vpop.permute.xlu0 %733
    %v736 = vadd.f32 %v731, %v734
    %v737 = vtanh.pop %v736
    %v738 = vmul.f32 %v729, %v737
    %v739 = vpack.c.bf16 %v738, %v738
    %v741 = vsel %vm131, %v739, 0
    %743 = vmatprep.subr.bf16.mxu0 0
    %744 = vmatpush1.bf16.msra.mxu0 %v252
    %745 = vmatprep.subr.bf16.mxu0 0
    %746 = vmatpush1.bf16.msra.mxu0 %v253
    %747 = vmatprep.subr.bf16.mxu0 0
    %748 = vmatpush1.bf16.msra.mxu0 0
    %749 = vmatprep.subr.bf16.mxu0 0
    %750 = vmatpush1.bf16.msra.mxu0 0
    %751 = vmatprep.subr.bf16.mxu0 0
    %752 = vmatpush1.bf16.msra.mxu0 0
    %753 = vmatprep.subr.bf16.mxu0 0
    %754 = vmatpush1.bf16.msra.mxu0 0
    %755 = vmatprep.subr.bf16.mxu0 0
    %756 = vmatpush1.bf16.msra.mxu0 0
    %757 = vmatprep.subr.bf16.mxu0 0
    %758 = vmatpush1.bf16.msra.mxu0 0
    %759 = vmatprep.subr.bf16.mxu0 0
    %760 = vmatpush1.bf16.msra.mxu0 0
    %761 = vmatprep.subr.bf16.mxu0 0
    %762 = vmatpush1.bf16.msra.mxu0 0
    %763 = vmatprep.subr.bf16.mxu0 0
    %764 = vmatpush1.bf16.msra.mxu0 0
    %765 = vmatprep.subr.bf16.mxu0 0
    %766 = vmatpush1.bf16.msra.mxu0 0
    %767 = vmatprep.subr.bf16.mxu0 0
    %768 = vmatpush1.bf16.msra.mxu0 0
    %769 = vmatprep.subr.bf16.mxu0 0
    %770 = vmatpush1.bf16.msra.mxu0 0
    %771 = vmatprep.subr.bf16.mxu0 0
    %772 = vmatpush1.bf16.msra.mxu0 0
    %773 = vmatprep.subr.bf16.mxu0 0
    %774 = vmatpush1.bf16.msra.mxu0 0
    %775 = vmatprep.mubr.bf16.mxu0 0
    %776 = vmatmul.mubr.bf16.gmra.mrb[0].mxu0 %v741
    %v777 = vpop.f32.mrb[0].mxu0
    %v778 = vadd.f32 %v678, %v777
    %v779 = vpop.f32.mrb[0].mxu0
    %v780 = vpop.f32.mrb[0].mxu0
    %v781 = vpop.f32.mrb[0].mxu0
    %782 = vdwg.mxu0
    %v783 = vadd.f32 %v778, %v302
    %v784 = vmul.f32 %v783, %v117
    %v785 = vtanh.pop %v784
    %v786 = vmul.f32 %v785, %v117
    %v787 = vadd.f32 %v786, %v118
    %788 = vrot.lane.b32.xlu0 %v787, 64
    %v789 = vpop.permute.xlu0 %788
    %v790 = vmul.f32 %v787, %v789
    %v791 = vmul.f32 %v787, %v636
    %793 = vrot.lane.b32.xlu0 %v790, 96
    %v794 = vpop.permute.xlu0 %793
    %v796 = vadd.f32 %v791, %v794
    %v797 = vtanh.pop %v796
    %v798 = vmul.f32 %v789, %v797
    %v799 = vpack.c.bf16 %v798, %v798
    %v801 = vsel %vm131, %v799, 0
    %803 = vmatprep.subr.bf16.mxu0 0
    %804 = vmatpush1.bf16.msra.mxu0 %v127
    %805 = vmatprep.subr.bf16.mxu0 0
    %806 = vmatpush1.bf16.msra.mxu0 %v128
    %807 = vmatprep.subr.bf16.mxu0 0
    %808 = vmatpush1.bf16.msra.mxu0 0
    %809 = vmatprep.subr.bf16.mxu0 0
    %810 = vmatpush1.bf16.msra.mxu0 0
    %811 = vmatprep.subr.bf16.mxu0 0
    %812 = vmatpush1.bf16.msra.mxu0 0
    %813 = vmatprep.subr.bf16.mxu0 0
    %814 = vmatpush1.bf16.msra.mxu0 0
    %815 = vmatprep.subr.bf16.mxu0 0
    %816 = vmatpush1.bf16.msra.mxu0 0
    %817 = vmatprep.subr.bf16.mxu0 0
    %818 = vmatpush1.bf16.msra.mxu0 0
    %819 = vmatprep.subr.bf16.mxu0 0
    %820 = vmatpush1.bf16.msra.mxu0 0
    %821 = vmatprep.subr.bf16.mxu0 0
    %822 = vmatpush1.bf16.msra.mxu0 0
    %823 = vmatprep.subr.bf16.mxu0 0
    %824 = vmatpush1.bf16.msra.mxu0 0
    %825 = vmatprep.subr.bf16.mxu0 0
    %826 = vmatpush1.bf16.msra.mxu0 0
    %827 = vmatprep.subr.bf16.mxu0 0
    %828 = vmatpush1.bf16.msra.mxu0 0
    %829 = vmatprep.subr.bf16.mxu0 0
    %830 = vmatpush1.bf16.msra.mxu0 0
    %831 = vmatprep.subr.bf16.mxu0 0
    %832 = vmatpush1.bf16.msra.mxu0 0
    %833 = vmatprep.subr.bf16.mxu0 0
    %834 = vmatpush1.bf16.msra.mxu0 0
    %835 = vmatprep.mubr.bf16.mxu0 0
    %836 = vmatmul.mubr.bf16.gmra.mrb[0].mxu0 %v801
    %v837 = vpop.f32.mrb[0].mxu0
    %v838 = vadd.f32 0.0, %v837
    %v839 = vpop.f32.mrb[0].mxu0
    %v840 = vpop.f32.mrb[0].mxu0
    %v841 = vpop.f32.mrb[0].mxu0
    %842 = vdwg.mxu0
    %843 = vmatprep.subr.bf16.mxu0 0
    %844 = vmatpush1.bf16.msra.mxu0 %v183
    %845 = vmatprep.subr.bf16.mxu0 0
    %846 = vmatpush1.bf16.msra.mxu0 %v184
    %847 = vmatprep.subr.bf16.mxu0 0
    %848 = vmatpush1.bf16.msra.mxu0 0
    %849 = vmatprep.subr.bf16.mxu0 0
    %850 = vmatpush1.bf16.msra.mxu0 0
    %851 = vmatprep.subr.bf16.mxu0 0
    %852 = vmatpush1.bf16.msra.mxu0 0
    %853 = vmatprep.subr.bf16.mxu0 0
    %854 = vmatpush1.bf16.msra.mxu0 0
    %855 = vmatprep.subr.bf16.mxu0 0
    %856 = vmatpush1.bf16.msra.mxu0 0
    %857 = vmatprep.subr.bf16.mxu0 0
    %858 = vmatpush1.bf16.msra.mxu0 0
    %859 = vmatprep.subr.bf16.mxu0 0
    %860 = vmatpush1.bf16.msra.mxu0 0
    %861 = vmatprep.subr.bf16.mxu0 0
    %862 = vmatpush1.bf16.msra.mxu0 0
    %863 = vmatprep.subr.bf16.mxu0 0
    %864 = vmatpush1.bf16.msra.mxu0 0
    %865 = vmatprep.subr.bf16.mxu0 0
    %866 = vmatpush1.bf16.msra.mxu0 0
    %867 = vmatprep.subr.bf16.mxu0 0
    %868 = vmatpush1.bf16.msra.mxu0 0
    %869 = vmatprep.subr.bf16.mxu0 0
    %870 = vmatpush1.bf16.msra.mxu0 0
    %871 = vmatprep.subr.bf16.mxu0 0
    %872 = vmatpush1.bf16.msra.mxu0 0
    %873 = vmatprep.subr.bf16.mxu0 0
    %874 = vmatpush1.bf16.msra.mxu0 0
    %875 = vmatprep.mubr.bf16.mxu0 0
    %876 = vmatmul.mubr.bf16.gmra.mrb[0].mxu0 %v741
    %v877 = vpop.f32.mrb[0].mxu0
    %v878 = vadd.f32 0.0, %v877
    %v879 = vpop.f32.mrb[0].mxu0
    %v880 = vpop.f32.mrb[0].mxu0
    %v881 = vpop.f32.mrb[0].mxu0
    %882 = vdwg.mxu0
    %v883 = vadd.f32 %v110, %v878
    %v884 = vmul.f32 %v883, %v117
    %v885 = vtanh.pop %v884
    %v886 = vmul.f32 %v885, %v117
    %v887 = vadd.f32 %v886, %v118
    %888 = vrot.lane.b32.xlu0 %v887, 64
    %v889 = vpop.permute.xlu0 %888
    %v890 = vmul.f32 %v887, %v889
    %v891 = vmul.f32 %v887, %v736
    %893 = vrot.lane.b32.xlu0 %v890, 96
    %v894 = vpop.permute.xlu0 %893
    %v896 = vadd.f32 %v891, %v894
    %v897 = vtanh.pop %v896
    %v898 = vmul.f32 %v889, %v897
    %v899 = vpack.c.bf16 %v898, %v898
    %v901 = vsel %vm131, %v899, 0
    %903 = vmatprep.subr.bf16.mxu0 0
    %904 = vmatpush1.bf16.msra.mxu0 %v252
    %905 = vmatprep.subr.bf16.mxu0 0
    %906 = vmatpush1.bf16.msra.mxu0 %v253
    %907 = vmatprep.subr.bf16.mxu0 0
    %908 = vmatpush1.bf16.msra.mxu0 0
    %909 = vmatprep.subr.bf16.mxu0 0
    %910 = vmatpush1.bf16.msra.mxu0 0
    %911 = vmatprep.subr.bf16.mxu0 0
    %912 = vmatpush1.bf16.msra.mxu0 0
    %913 = vmatprep.subr.bf16.mxu0 0
    %914 = vmatpush1.bf16.msra.mxu0 0
    %915 = vmatprep.subr.bf16.mxu0 0
    %916 = vmatpush1.bf16.msra.mxu0 0
    %917 = vmatprep.subr.bf16.mxu0 0
    %918 = vmatpush1.bf16.msra.mxu0 0
    %919 = vmatprep.subr.bf16.mxu0 0
    %920 = vmatpush1.bf16.msra.mxu0 0
    %921 = vmatprep.subr.bf16.mxu0 0
    %922 = vmatpush1.bf16.msra.mxu0 0
    %923 = vmatprep.subr.bf16.mxu0 0
    %924 = vmatpush1.bf16.msra.mxu0 0
    %925 = vmatprep.subr.bf16.mxu0 0
    %926 = vmatpush1.bf16.msra.mxu0 0
    %927 = vmatprep.subr.bf16.mxu0 0
    %928 = vmatpush1.bf16.msra.mxu0 0
    %929 = vmatprep.subr.bf16.mxu0 0
    %930 = vmatpush1.bf16.msra.mxu0 0
    %931 = vmatprep.subr.bf16.mxu0 0
    %932 = vmatpush1.bf16.msra.mxu0 0
    %933 = vmatprep.subr.bf16.mxu0 0
    %934 = vmatpush1.bf16.msra.mxu0 0
    %935 = vmatprep.mubr.bf16.mxu0 0
    %936 = vmatmul.mubr.bf16.gmra.mrb[0].mxu0 %v901
    %v937 = vpop.f32.mrb[0].mxu0
    %v938 = vadd.f32 %v838, %v937
    %v939 = vpop.f32.mrb[0].mxu0
    %v940 = vpop.f32.mrb[0].mxu0
    %v941 = vpop.f32.mrb[0].mxu0
    %942 = vdwg.mxu0
    %v943 = vadd.f32 %v938, %v302
    %v944 = vmul.f32 %v943, %v117
    %v945 = vtanh.pop %v944
    %v946 = vmul.f32 %v945, %v117
    %v947 = vadd.f32 %v946, %v118
    %948 = vrot.lane.b32.xlu0 %v947, 64
    %v949 = vpop.permute.xlu0 %948
    %v950 = vmul.f32 %v947, %v949
    %v951 = vmul.f32 %v947, %v796
    %953 = vrot.lane.b32.xlu0 %v950, 96
    %v954 = vpop.permute.xlu0 %953
    %v956 = vadd.f32 %v951, %v954
    %v957 = vtanh.pop %v956
    %v958 = vmul.f32 %v949, %v957
    %v959 = vpack.c.bf16 %v958, %v958
    %v961 = vsel %vm131, %v959, 0
    %963 = vmatprep.subr.bf16.mxu0 0
    %964 = vmatpush1.bf16.msra.mxu0 %v127
    %965 = vmatprep.subr.bf16.mxu0 0
    %966 = vmatpush1.bf16.msra.mxu0 %v128
    %967 = vmatprep.subr.bf16.mxu0 0
    %968 = vmatpush1.bf16.msra.mxu0 0
    %969 = vmatprep.subr.bf16.mxu0 0
    %970 = vmatpush1.bf16.msra.mxu0 0
    %971 = vmatprep.subr.bf16.mxu0 0
    %972 = vmatpush1.bf16.msra.mxu0 0
    %973 = vmatprep.subr.bf16.mxu0 0
    %974 = vmatpush1.bf16.msra.mxu0 0
    %975 = vmatprep.subr.bf16.mxu0 0
    %976 = vmatpush1.bf16.msra.mxu0 0
    %977 = vmatprep.subr.bf16.mxu0 0
    %978 = vmatpush1.bf16.msra.mxu0 0
    %979 = vmatprep.subr.bf16.mxu0 0
    %980 = vmatpush1.bf16.msra.mxu0 0
    %981 = vmatprep.subr.bf16.mxu0 0
    %982 = vmatpush1.bf16.msra.mxu0 0
    %983 = vmatprep.subr.bf16.mxu0 0
    %984 = vmatpush1.bf16.msra.mxu0 0
    %985 = vmatprep.subr.bf16.mxu0 0
    %986 = vmatpush1.bf16.msra.mxu0 0
    %987 = vmatprep.subr.bf16.mxu0 0
    %988 = vmatpush1.bf16.msra.mxu0 0
    %989 = vmatprep.subr.bf16.mxu0 0
    %990 = vmatpush1.bf16.msra.mxu0 0
    %991 = vmatprep.subr.bf16.mxu0 0
    %992 = vmatpush1.bf16.msra.mxu0 0
    %993 = vmatprep.subr.bf16.mxu0 0
    %994 = vmatpush1.bf16.msra.mxu0 0
    %995 = vmatprep.mubr.bf16.mxu0 0
    %996 = vmatmul.mubr.bf16.gmra.mrb[0].mxu0 %v961
    %v997 = vpop.f32.mrb[0].mxu0
    %v998 = vadd.f32 0.0, %v997
    %v999 = vpop.f32.mrb[0].mxu0
    %v1000 = vpop.f32.mrb[0].mxu0
    %v1001 = vpop.f32.mrb[0].mxu0
    %1002 = vdwg.mxu0
    %1003 = vmatprep.subr.bf16.mxu0 0
    %1004 = vmatpush1.bf16.msra.mxu0 %v183
    %1005 = vmatprep.subr.bf16.mxu0 0
    %1006 = vmatpush1.bf16.msra.mxu0 %v184
    %1007 = vmatprep.subr.bf16.mxu0 0
    %1008 = vmatpush1.bf16.msra.mxu0 0
    %1009 = vmatprep.subr.bf16.mxu0 0
    %1010 = vmatpush1.bf16.msra.mxu0 0
    %1011 = vmatprep.subr.bf16.mxu0 0
    %1012 = vmatpush1.bf16.msra.mxu0 0
    %1013 = vmatprep.subr.bf16.mxu0 0
    %1014 = vmatpush1.bf16.msra.mxu0 0
    %1015 = vmatprep.subr.bf16.mxu0 0
    %1016 = vmatpush1.bf16.msra.mxu0 0
    %1017 = vmatprep.subr.bf16.mxu0 0
    %1018 = vmatpush1.bf16.msra.mxu0 0
    %1019 = vmatprep.subr.bf16.mxu0 0
    %1020 = vmatpush1.bf16.msra.mxu0 0
    %1021 = vmatprep.subr.bf16.mxu0 0
    %1022 = vmatpush1.bf16.msra.mxu0 0
    %1023 = vmatprep.subr.bf16.mxu0 0
    %1024 = vmatpush1.bf16.msra.mxu0 0
    %1025 = vmatprep.subr.bf16.mxu0 0
    %1026 = vmatpush1.bf16.msra.mxu0 0
    %1027 = vmatprep.subr.bf16.mxu0 0
    %1028 = vmatpush1.bf16.msra.mxu0 0
    %1029 = vmatprep.subr.bf16.mxu0 0
    %1030 = vmatpush1.bf16.msra.mxu0 0
    %1031 = vmatprep.subr.bf16.mxu0 0
    %1032 = vmatpush1.bf16.msra.mxu0 0
    %1033 = vmatprep.subr.bf16.mxu0 0
    %1034 = vmatpush1.bf16.msra.mxu0 0
    %1035 = vmatprep.mubr.bf16.mxu0 0
    %1036 = vmatmul.mubr.bf16.gmra.mrb[0].mxu0 %v901
    %v1037 = vpop.f32.mrb[0].mxu0
    %v1038 = vadd.f32 0.0, %v1037
    %v1039 = vpop.f32.mrb[0].mxu0
    %v1040 = vpop.f32.mrb[0].mxu0
    %v1041 = vpop.f32.mrb[0].mxu0
    %1042 = vdwg.mxu0
    %v1043 = vadd.f32 %v111, %v1038
    %v1044 = vmul.f32 %v1043, %v117
    %v1045 = vtanh.pop %v1044
    %v1046 = vmul.f32 %v1045, %v117
    %v1047 = vadd.f32 %v1046, %v118
    %1048 = vrot.lane.b32.xlu0 %v1047, 64
    %v1049 = vpop.permute.xlu0 %1048
    %v1050 = vmul.f32 %v1047, %v1049
    %v1051 = vmul.f32 %v1047, %v896
    %1053 = vrot.lane.b32.xlu0 %v1050, 96
    %v1054 = vpop.permute.xlu0 %1053
    %v1056 = vadd.f32 %v1051, %v1054
    %v1057 = vtanh.pop %v1056
    %v1058 = vmul.f32 %v1049, %v1057
    %v1059 = vpack.c.bf16 %v1058, %v1058
    %v1061 = vsel %vm131, %v1059, 0
    %1063 = vmatprep.subr.bf16.mxu0 0
    %1064 = vmatpush1.bf16.msra.mxu0 %v252
    %1065 = vmatprep.subr.bf16.mxu0 0
    %1066 = vmatpush1.bf16.msra.mxu0 %v253
    %1067 = vmatprep.subr.bf16.mxu0 0
    %1068 = vmatpush1.bf16.msra.mxu0 0
    %1069 = vmatprep.subr.bf16.mxu0 0
    %1070 = vmatpush1.bf16.msra.mxu0 0
    %1071 = vmatprep.subr.bf16.mxu0 0
    %1072 = vmatpush1.bf16.msra.mxu0 0
    %1073 = vmatprep.subr.bf16.mxu0 0
    %1074 = vmatpush1.bf16.msra.mxu0 0
    %1075 = vmatprep.subr.bf16.mxu0 0
    %1076 = vmatpush1.bf16.msra.mxu0 0
    %1077 = vmatprep.subr.bf16.mxu0 0
    %1078 = vmatpush1.bf16.msra.mxu0 0
    %1079 = vmatprep.subr.bf16.mxu0 0
    %1080 = vmatpush1.bf16.msra.mxu0 0
    %1081 = vmatprep.subr.bf16.mxu0 0
    %1082 = vmatpush1.bf16.msra.mxu0 0
    %1083 = vmatprep.subr.bf16.mxu0 0
    %1084 = vmatpush1.bf16.msra.mxu0 0
    %1085 = vmatprep.subr.bf16.mxu0 0
    %1086 = vmatpush1.bf16.msra.mxu0 0
    %1087 = vmatprep.subr.bf16.mxu0 0
    %1088 = vmatpush1.bf16.msra.mxu0 0
    %1089 = vmatprep.subr.bf16.mxu0 0
    %1090 = vmatpush1.bf16.msra.mxu0 0
    %1091 = vmatprep.subr.bf16.mxu0 0
    %1092 = vmatpush1.bf16.msra.mxu0 0
    %1093 = vmatprep.subr.bf16.mxu0 0
    %1094 = vmatpush1.bf16.msra.mxu0 0
    %1095 = vmatprep.mubr.bf16.mxu0 0
    %1096 = vmatmul.mubr.bf16.gmra.mrb[0].mxu0 %v1061
    %v1097 = vpop.f32.mrb[0].mxu0
    %v1098 = vadd.f32 %v998, %v1097
    %v1099 = vpop.f32.mrb[0].mxu0
    %v1100 = vpop.f32.mrb[0].mxu0
    %v1101 = vpop.f32.mrb[0].mxu0
    %1102 = vdwg.mxu0
    %v1103 = vadd.f32 %v1098, %v302
    %v1104 = vmul.f32 %v1103, %v117
    %v1105 = vtanh.pop %v1104
    %v1106 = vmul.f32 %v1105, %v117
    %v1107 = vadd.f32 %v1106, %v118
    %1108 = vrot.lane.b32.xlu0 %v1107, 64
    %v1109 = vpop.permute.xlu0 %1108
    %v1110 = vmul.f32 %v1107, %v1109
    %v1111 = vmul.f32 %v1107, %v956
    %1113 = vrot.lane.b32.xlu0 %v1110, 96
    %v1114 = vpop.permute.xlu0 %1113
    %v1116 = vadd.f32 %v1111, %v1114
    %v1117 = vtanh.pop %v1116
    %v1118 = vmul.f32 %v1109, %v1117
    %v1119 = vpack.c.bf16 %v1118, %v1118
    %v1121 = vsel %vm131, %v1119, 0
    %1123 = vmatprep.subr.bf16.mxu0 0
    %1124 = vmatpush1.bf16.msra.mxu0 %v127
    %1125 = vmatprep.subr.bf16.mxu0 0
    %1126 = vmatpush1.bf16.msra.mxu0 %v128
    %1127 = vmatprep.subr.bf16.mxu0 0
    %1128 = vmatpush1.bf16.msra.mxu0 0
    %1129 = vmatprep.subr.bf16.mxu0 0
    %1130 = vmatpush1.bf16.msra.mxu0 0
    %1131 = vmatprep.subr.bf16.mxu0 0
    %1132 = vmatpush1.bf16.msra.mxu0 0
    %1133 = vmatprep.subr.bf16.mxu0 0
    %1134 = vmatpush1.bf16.msra.mxu0 0
    %1135 = vmatprep.subr.bf16.mxu0 0
    %1136 = vmatpush1.bf16.msra.mxu0 0
    %1137 = vmatprep.subr.bf16.mxu0 0
    %1138 = vmatpush1.bf16.msra.mxu0 0
    %1139 = vmatprep.subr.bf16.mxu0 0
    %1140 = vmatpush1.bf16.msra.mxu0 0
    %1141 = vmatprep.subr.bf16.mxu0 0
    %1142 = vmatpush1.bf16.msra.mxu0 0
    %1143 = vmatprep.subr.bf16.mxu0 0
    %1144 = vmatpush1.bf16.msra.mxu0 0
    %1145 = vmatprep.subr.bf16.mxu0 0
    %1146 = vmatpush1.bf16.msra.mxu0 0
    %1147 = vmatprep.subr.bf16.mxu0 0
    %1148 = vmatpush1.bf16.msra.mxu0 0
    %1149 = vmatprep.subr.bf16.mxu0 0
    %1150 = vmatpush1.bf16.msra.mxu0 0
    %1151 = vmatprep.subr.bf16.mxu0 0
    %1152 = vmatpush1.bf16.msra.mxu0 0
    %1153 = vmatprep.subr.bf16.mxu0 0
    %1154 = vmatpush1.bf16.msra.mxu0 0
    %1155 = vmatprep.mubr.bf16.mxu0 0
    %1156 = vmatmul.mubr.bf16.gmra.mrb[0].mxu0 %v1121
    %v1157 = vpop.f32.mrb[0].mxu0
    %v1158 = vadd.f32 0.0, %v1157
    %v1159 = vpop.f32.mrb[0].mxu0
    %v1160 = vpop.f32.mrb[0].mxu0
    %v1161 = vpop.f32.mrb[0].mxu0
    %1162 = vdwg.mxu0
    %1163 = vmatprep.subr.bf16.mxu0 0
    %1164 = vmatpush1.bf16.msra.mxu0 %v183
    %1165 = vmatprep.subr.bf16.mxu0 0
    %1166 = vmatpush1.bf16.msra.mxu0 %v184
    %1167 = vmatprep.subr.bf16.mxu0 0
    %1168 = vmatpush1.bf16.msra.mxu0 0
    %1169 = vmatprep.subr.bf16.mxu0 0
    %1170 = vmatpush1.bf16.msra.mxu0 0
    %1171 = vmatprep.subr.bf16.mxu0 0
    %1172 = vmatpush1.bf16.msra.mxu0 0
    %1173 = vmatprep.subr.bf16.mxu0 0
    %1174 = vmatpush1.bf16.msra.mxu0 0
    %1175 = vmatprep.subr.bf16.mxu0 0
    %1176 = vmatpush1.bf16.msra.mxu0 0
    %1177 = vmatprep.subr.bf16.mxu0 0
    %1178 = vmatpush1.bf16.msra.mxu0 0
    %1179 = vmatprep.subr.bf16.mxu0 0
    %1180 = vmatpush1.bf16.msra.mxu0 0
    %1181 = vmatprep.subr.bf16.mxu0 0
    %1182 = vmatpush1.bf16.msra.mxu0 0
    %1183 = vmatprep.subr.bf16.mxu0 0
    %1184 = vmatpush1.bf16.msra.mxu0 0
    %1185 = vmatprep.subr.bf16.mxu0 0
    %1186 = vmatpush1.bf16.msra.mxu0 0
    %1187 = vmatprep.subr.bf16.mxu0 0
    %1188 = vmatpush1.bf16.msra.mxu0 0
    %1189 = vmatprep.subr.bf16.mxu0 0
    %1190 = vmatpush1.bf16.msra.mxu0 0
    %1191 = vmatprep.subr.bf16.mxu0 0
    %1192 = vmatpush1.bf16.msra.mxu0 0
    %1193 = vmatprep.subr.bf16.mxu0 0
    %1194 = vmatpush1.bf16.msra.mxu0 0
    %1195 = vmatprep.mubr.bf16.mxu0 0
    %1196 = vmatmul.mubr.bf16.gmra.mrb[0].mxu0 %v1061
    %v1197 = vpop.f32.mrb[0].mxu0
    %v1198 = vadd.f32 0.0, %v1197
    %v1199 = vpop.f32.mrb[0].mxu0
    %v1200 = vpop.f32.mrb[0].mxu0
    %v1201 = vpop.f32.mrb[0].mxu0
    %1202 = vdwg.mxu0
    %v1203 = vadd.f32 %v112, %v1198
    %v1204 = vmul.f32 %v1203, %v117
    %v1205 = vtanh.pop %v1204
    %v1206 = vmul.f32 %v1205, %v117
    %v1207 = vadd.f32 %v1206, %v118
    %1208 = vrot.lane.b32.xlu0 %v1207, 64
    %v1209 = vpop.permute.xlu0 %1208
    %v1210 = vmul.f32 %v1207, %v1209
    %v1211 = vmul.f32 %v1207, %v1056
    %1213 = vrot.lane.b32.xlu0 %v1210, 96
    %v1214 = vpop.permute.xlu0 %1213
    %v1216 = vadd.f32 %v1211, %v1214
    %v1217 = vtanh.pop %v1216
    %v1218 = vmul.f32 %v1209, %v1217
    %v1219 = vpack.c.bf16 %v1218, %v1218
    %v1221 = vsel %vm131, %v1219, 0
    %1223 = vmatprep.subr.bf16.mxu0 0
    %1224 = vmatpush1.bf16.msra.mxu0 %v252
    %1225 = vmatprep.subr.bf16.mxu0 0
    %1226 = vmatpush1.bf16.msra.mxu0 %v253
    %1227 = vmatprep.subr.bf16.mxu0 0
    %1228 = vmatpush1.bf16.msra.mxu0 0
    %1229 = vmatprep.subr.bf16.mxu0 0
    %1230 = vmatpush1.bf16.msra.mxu0 0
    %1231 = vmatprep.subr.bf16.mxu0 0
    %1232 = vmatpush1.bf16.msra.mxu0 0
    %1233 = vmatprep.subr.bf16.mxu0 0
    %1234 = vmatpush1.bf16.msra.mxu0 0
    %1235 = vmatprep.subr.bf16.mxu0 0
    %1236 = vmatpush1.bf16.msra.mxu0 0
    %1237 = vmatprep.subr.bf16.mxu0 0
    %1238 = vmatpush1.bf16.msra.mxu0 0
    %1239 = vmatprep.subr.bf16.mxu0 0
    %1240 = vmatpush1.bf16.msra.mxu0 0
    %1241 = vmatprep.subr.bf16.mxu0 0
    %1242 = vmatpush1.bf16.msra.mxu0 0
    %1243 = vmatprep.subr.bf16.mxu0 0
    %1244 = vmatpush1.bf16.msra.mxu0 0
    %1245 = vmatprep.subr.bf16.mxu0 0
    %1246 = vmatpush1.bf16.msra.mxu0 0
    %1247 = vmatprep.subr.bf16.mxu0 0
    %1248 = vmatpush1.bf16.msra.mxu0 0
    %1249 = vmatprep.subr.bf16.mxu0 0
    %1250 = vmatpush1.bf16.msra.mxu0 0
    %1251 = vmatprep.subr.bf16.mxu0 0
    %1252 = vmatpush1.bf16.msra.mxu0 0
    %1253 = vmatprep.subr.bf16.mxu0 0
    %1254 = vmatpush1.bf16.msra.mxu0 0
    %1255 = vmatprep.mubr.bf16.mxu0 0
    %1256 = vmatmul.mubr.bf16.gmra.mrb[0].mxu0 %v1221
    %v1257 = vpop.f32.mrb[0].mxu0
    %v1258 = vadd.f32 %v1158, %v1257
    %v1259 = vpop.f32.mrb[0].mxu0
    %v1260 = vpop.f32.mrb[0].mxu0
    %v1261 = vpop.f32.mrb[0].mxu0
    %1262 = vdwg.mxu0
    %v1263 = vadd.f32 %v1258, %v302
    %v1264 = vmul.f32 %v1263, %v117
    %v1265 = vtanh.pop %v1264
    %v1266 = vmul.f32 %v1265, %v117
    %v1267 = vadd.f32 %v1266, %v118
    %1268 = vrot.lane.b32.xlu0 %v1267, 64
    %v1269 = vpop.permute.xlu0 %1268
    %v1270 = vmul.f32 %v1267, %v1269
    %v1271 = vmul.f32 %v1267, %v1116
    %1273 = vrot.lane.b32.xlu0 %v1270, 96
    %v1274 = vpop.permute.xlu0 %1273
    %v1276 = vadd.f32 %v1271, %v1274
    %v1277 = vtanh.pop %v1276
    %v1278 = vmul.f32 %v1269, %v1277
    %v1279 = vpack.c.bf16 %v1278, %v1278
    %v1281 = vsel %vm131, %v1279, 0
    %1283 = vmatprep.subr.bf16.mxu0 0
    %1284 = vmatpush1.bf16.msra.mxu0 %v127
    %1285 = vmatprep.subr.bf16.mxu0 0
    %1286 = vmatpush1.bf16.msra.mxu0 %v128
    %1287 = vmatprep.subr.bf16.mxu0 0
    %1288 = vmatpush1.bf16.msra.mxu0 0
    %1289 = vmatprep.subr.bf16.mxu0 0
    %1290 = vmatpush1.bf16.msra.mxu0 0
    %1291 = vmatprep.subr.bf16.mxu0 0
    %1292 = vmatpush1.bf16.msra.mxu0 0
    %1293 = vmatprep.subr.bf16.mxu0 0
    %1294 = vmatpush1.bf16.msra.mxu0 0
    %1295 = vmatprep.subr.bf16.mxu0 0
    %1296 = vmatpush1.bf16.msra.mxu0 0
    %1297 = vmatprep.subr.bf16.mxu0 0
    %1298 = vmatpush1.bf16.msra.mxu0 0
    %1299 = vmatprep.subr.bf16.mxu0 0
    %1300 = vmatpush1.bf16.msra.mxu0 0
    %1301 = vmatprep.subr.bf16.mxu0 0
    %1302 = vmatpush1.bf16.msra.mxu0 0
    %1303 = vmatprep.subr.bf16.mxu0 0
    %1304 = vmatpush1.bf16.msra.mxu0 0
    %1305 = vmatprep.subr.bf16.mxu0 0
    %1306 = vmatpush1.bf16.msra.mxu0 0
    %1307 = vmatprep.subr.bf16.mxu0 0
    %1308 = vmatpush1.bf16.msra.mxu0 0
    %1309 = vmatprep.subr.bf16.mxu0 0
    %1310 = vmatpush1.bf16.msra.mxu0 0
    %1311 = vmatprep.subr.bf16.mxu0 0
    %1312 = vmatpush1.bf16.msra.mxu0 0
    %1313 = vmatprep.subr.bf16.mxu0 0
    %1314 = vmatpush1.bf16.msra.mxu0 0
    %1315 = vmatprep.mubr.bf16.mxu0 0
    %1316 = vmatmul.mubr.bf16.gmra.mrb[0].mxu0 %v1281
    %v1317 = vpop.f32.mrb[0].mxu0
    %v1318 = vadd.f32 0.0, %v1317
    %v1319 = vpop.f32.mrb[0].mxu0
    %v1320 = vpop.f32.mrb[0].mxu0
    %v1321 = vpop.f32.mrb[0].mxu0
    %1322 = vdwg.mxu0
    %1323 = vmatprep.subr.bf16.mxu0 0
    %1324 = vmatpush1.bf16.msra.mxu0 %v183
    %1325 = vmatprep.subr.bf16.mxu0 0
    %1326 = vmatpush1.bf16.msra.mxu0 %v184
    %1327 = vmatprep.subr.bf16.mxu0 0
    %1328 = vmatpush1.bf16.msra.mxu0 0
    %1329 = vmatprep.subr.bf16.mxu0 0
    %1330 = vmatpush1.bf16.msra.mxu0 0
    %1331 = vmatprep.subr.bf16.mxu0 0
    %1332 = vmatpush1.bf16.msra.mxu0 0
    %1333 = vmatprep.subr.bf16.mxu0 0
    %1334 = vmatpush1.bf16.msra.mxu0 0
    %1335 = vmatprep.subr.bf16.mxu0 0
    %1336 = vmatpush1.bf16.msra.mxu0 0
    %1337 = vmatprep.subr.bf16.mxu0 0
    %1338 = vmatpush1.bf16.msra.mxu0 0
    %1339 = vmatprep.subr.bf16.mxu0 0
    %1340 = vmatpush1.bf16.msra.mxu0 0
    %1341 = vmatprep.subr.bf16.mxu0 0
    %1342 = vmatpush1.bf16.msra.mxu0 0
    %1343 = vmatprep.subr.bf16.mxu0 0
    %1344 = vmatpush1.bf16.msra.mxu0 0
    %1345 = vmatprep.subr.bf16.mxu0 0
    %1346 = vmatpush1.bf16.msra.mxu0 0
    %1347 = vmatprep.subr.bf16.mxu0 0
    %1348 = vmatpush1.bf16.msra.mxu0 0
    %1349 = vmatprep.subr.bf16.mxu0 0
    %1350 = vmatpush1.bf16.msra.mxu0 0
    %1351 = vmatprep.subr.bf16.mxu0 0
    %1352 = vmatpush1.bf16.msra.mxu0 0
    %1353 = vmatprep.subr.bf16.mxu0 0
    %1354 = vmatpush1.bf16.msra.mxu0 0
    %1355 = vmatprep.mubr.bf16.mxu0 0
    %1356 = vmatmul.mubr.bf16.gmra.mrb[0].mxu0 %v1221
    %v1357 = vpop.f32.mrb[0].mxu0
    %v1358 = vadd.f32 0.0, %v1357
    %v1359 = vpop.f32.mrb[0].mxu0
    %v1360 = vpop.f32.mrb[0].mxu0
    %v1361 = vpop.f32.mrb[0].mxu0
    %1362 = vdwg.mxu0
    %v1363 = vadd.f32 %v113, %v1358
    %v1364 = vmul.f32 %v1363, %v117
    %v1365 = vtanh.pop %v1364
    %v1366 = vmul.f32 %v1365, %v117
    %v1367 = vadd.f32 %v1366, %v118
    %1368 = vrot.lane.b32.xlu0 %v1367, 64
    %v1369 = vpop.permute.xlu0 %1368
    %v1370 = vmul.f32 %v1367, %v1369
    %v1371 = vmul.f32 %v1367, %v1216
    %1373 = vrot.lane.b32.xlu0 %v1370, 96
    %v1374 = vpop.permute.xlu0 %1373
    %v1376 = vadd.f32 %v1371, %v1374
    %v1377 = vtanh.pop %v1376
    %v1378 = vmul.f32 %v1369, %v1377
    %v1379 = vpack.c.bf16 %v1378, %v1378
    %v1381 = vsel %vm131, %v1379, 0
    %1383 = vmatprep.subr.bf16.mxu0 0
    %1384 = vmatpush1.bf16.msra.mxu0 %v252
    %1385 = vmatprep.subr.bf16.mxu0 0
    %1386 = vmatpush1.bf16.msra.mxu0 %v253
    %1387 = vmatprep.subr.bf16.mxu0 0
    %1388 = vmatpush1.bf16.msra.mxu0 0
    %1389 = vmatprep.subr.bf16.mxu0 0
    %1390 = vmatpush1.bf16.msra.mxu0 0
    %1391 = vmatprep.subr.bf16.mxu0 0
    %1392 = vmatpush1.bf16.msra.mxu0 0
    %1393 = vmatprep.subr.bf16.mxu0 0
    %1394 = vmatpush1.bf16.msra.mxu0 0
    %1395 = vmatprep.subr.bf16.mxu0 0
    %1396 = vmatpush1.bf16.msra.mxu0 0
    %1397 = vmatprep.subr.bf16.mxu0 0
    %1398 = vmatpush1.bf16.msra.mxu0 0
    %1399 = vmatprep.subr.bf16.mxu0 0
    %1400 = vmatpush1.bf16.msra.mxu0 0
    %1401 = vmatprep.subr.bf16.mxu0 0
    %1402 = vmatpush1.bf16.msra.mxu0 0
    %1403 = vmatprep.subr.bf16.mxu0 0
    %1404 = vmatpush1.bf16.msra.mxu0 0
    %1405 = vmatprep.subr.bf16.mxu0 0
    %1406 = vmatpush1.bf16.msra.mxu0 0
    %1407 = vmatprep.subr.bf16.mxu0 0
    %1408 = vmatpush1.bf16.msra.mxu0 0
    %1409 = vmatprep.subr.bf16.mxu0 0
    %1410 = vmatpush1.bf16.msra.mxu0 0
    %1411 = vmatprep.subr.bf16.mxu0 0
    %1412 = vmatpush1.bf16.msra.mxu0 0
    %1413 = vmatprep.subr.bf16.mxu0 0
    %1414 = vmatpush1.bf16.msra.mxu0 0
    %1415 = vmatprep.mubr.bf16.mxu0 0
    %1416 = vmatmul.mubr.bf16.gmra.mrb[0].mxu0 %v1381
    %v1417 = vpop.f32.mrb[0].mxu0
    %v1418 = vadd.f32 %v1318, %v1417
    %v1419 = vpop.f32.mrb[0].mxu0
    %v1420 = vpop.f32.mrb[0].mxu0
    %v1421 = vpop.f32.mrb[0].mxu0
    %1422 = vdwg.mxu0
    %v1423 = vadd.f32 %v1418, %v302
    %v1424 = vmul.f32 %v1423, %v117
    %v1425 = vtanh.pop %v1424
    %v1426 = vmul.f32 %v1425, %v117
    %v1427 = vadd.f32 %v1426, %v118
    %1428 = vrot.lane.b32.xlu0 %v1427, 64
    %v1429 = vpop.permute.xlu0 %1428
    %v1430 = vmul.f32 %v1427, %v1429
    %v1431 = vmul.f32 %v1427, %v1276
    %1433 = vrot.lane.b32.xlu0 %v1430, 96
    %v1434 = vpop.permute.xlu0 %1433
    %v1436 = vadd.f32 %v1431, %v1434
    %v1437 = vtanh.pop %v1436
    %v1438 = vmul.f32 %v1429, %v1437
    %v1439 = vlaneseq
    %v1440 = vshrl.u32 %v1439, 7
    %v1441 = vsub.s32 3, %v1440
    %v1442 = vrot.slane %v29, %v1441
    %v1443 = vmul.f32 %v1438, %v1442
    %vm1444 = vcmask 254976
    %v1445 = vsel %vm1444, %v1443, 0.0
    %1446 = vadd.xlane.f32.xlu0 %v1445
    %v1447 = vpop.xlane.xlu0 %1446
    %v1448 = vlaneseq
    %v1449 = vshrl.u32 %v1448, 7
    %v1450 = vsub.s32 4, %v1449
    %v1451 = vrot.slane %v29, %v1450
    %v1452 = vadd.f32 %v1447, %v1451
    %vm1453 = vcmask 1024
    %1454 = vst.msk [vmem:[%s3] sm:$0x3] %vm1453, %v1452
    // Predicated region
    $region18: #{tpu_custom_call.1} parent=1 // pred_check
      _
    $region19: #{tpu_custom_call.1} parent=1 // pred_check_branch
      %1456 = sbr.rel (0) target = $region21
    $region20: #{tpu_custom_call.1} parent=1 // pred_region
      _
    $region21: #{tpu_custom_call.1} parent=1 // pred_fallthru
      _
    // Predicated region
    $region22: #{tpu_custom_call.1} parent=1 // pred_check
      _
    $region23: #{tpu_custom_call.1} parent=1 // pred_check_branch
      %1458 = sbr.rel (0) target = $region25
    $region24: #{tpu_custom_call.1} parent=1 // pred_region
      _
    $region25: #{tpu_custom_call.1} parent=1 // pred_fallthru
      _
    %1459 = vsyncpa [#allocation3], 1

</llo_original>
